<compile_context>
chip_gen: v5e
topology: v5e:2x2
jax: 0.10.0
libtpu: 0.0.40
codegen_flags: <defaults>
</compile_context>

<pallas_src>
import functools

import jax
import jax.numpy as jnp
from jax.experimental import pallas as pl
from jax.experimental.pallas import tpu as pltpu


def _round_up(x, m):
    return ((x + m - 1) // m) * m


# ----------------------------------------------------------------------------
# Fused batched kernel (TB nodes per grid step)
# ----------------------------------------------------------------------------
def _node_agg_kernel(self_ref, tgt_ref,                     # (TB, D) each
                     ehist_ref, erhist_ref, eneigh_ref,     # (TB,H*D) (TB,H*D) (TB,A*D)
                     gum_ref,                               # (TB, N)
                     wself_ref, wtgt_ref, b_ref,            # (D,D) (D,D) (1,D)
                     tile_h_ref, tile_a_ref,                # (D,H*D) (D,A*D)
                     seg_h_ref, seg_a_ref,                  # (H*D,N) (A*D,N)
                     segT_h_ref, segT_a_ref,                # (N,H*D) (N,A*D)
                     scat_h_ref, scat_a_ref,                # (H*D,D) (A*D,D)
                     wslab_h_ref, w1slab_a_ref, sbias_ref,  # (2,H*D) (1,A*D) (1,N)
                     o_ref,                                 # (TB, D)
                     *, k_select):
    f32 = jnp.float32
    ehist = ehist_ref[...]                                   # (TB, H*D) lane-dense
    erhist = erhist_ref[...]                                 # (TB, H*D)
    eneigh = eneigh_ref[...]                                 # (TB, A*D)

    # ---- query = Linear(cat(self, target)) as two (TB,D)x(D,D) MXU matmuls --
    q = (jnp.dot(self_ref[...], wself_ref[...], preferred_element_type=f32)
         + jnp.dot(tgt_ref[...], wtgt_ref[...], preferred_element_type=f32)
         + b_ref[...])                                       # (TB, D)

    # ---- -||query - e_uv||_2 per neighbor: lane-dense diff^2, MXU segment sum
    q_h = jnp.dot(q, tile_h_ref[...], preferred_element_type=f32)   # (TB, H*D)
    q_a = jnp.dot(q, tile_a_ref[...], preferred_element_type=f32)   # (TB, A*D)
    dh = ehist - q_h
    da = eneigh - q_a
    sq = (jnp.dot(dh * dh, seg_h_ref[...], preferred_element_type=f32)
          + jnp.dot(da * da, seg_a_ref[...], preferred_element_type=f32))
    dist = -jnp.sqrt(sq)                                     # (TB, N)

    # ---- Gumbel-top-K sampling without replacement ---------------------------
    # softmax1's log-normalizer is a per-row constant -> dropped; the top-k of
    # (dist + gumbel) is bit-identical to top-k of (log softmax(dist) + gumbel).
    key = dist + gum_ref[...]                                # (TB, N)
    # TODO(synk): for N >~ 64 chunk this (TB,N,N) rank over TB with fori_loop.
    beats = key[:, None, :] > key[:, :, None]                # (TB, N, N)
    rank = jnp.sum(beats.astype(jnp.int32), axis=-1)         # (TB, N)
    mask = rank < k_select                                   # (TB, N)

    # ---- relation attention: lane-dense weighting + MXU segment sum ----------
    wh = wslab_h_ref[...]
    w1h = wh[0:1, :]                                         # (1, H*D)
    w2h = wh[1:2, :]                                         # (1, H*D)
    s = (jnp.dot(ehist * w1h + erhist * w2h, seg_h_ref[...],
                 preferred_element_type=f32)
         + jnp.dot(eneigh * w1slab_a_ref[...], seg_a_ref[...],
                   preferred_element_type=f32)
         + sbias_ref[...])                                   # (TB, N)
    s = jnp.where(mask, s, -1e30)
    m2 = jnp.max(s, axis=-1, keepdims=True)
    e = jnp.exp(s - m2) * mask.astype(f32)
    att = e * pl.reciprocal(jnp.sum(e, axis=-1, keepdims=True), approx=True)

    # ---- attention-weighted neighbor sum: expand att (MXU) + scatter (MXU) ---
    att_h = jnp.dot(att, segT_h_ref[...], preferred_element_type=f32)  # (TB,H*D)
    att_a = jnp.dot(att, segT_a_ref[...], preferred_element_type=f32)  # (TB,A*D)
    out = (jnp.dot(att_h * ehist, scat_h_ref[...], preferred_element_type=f32)
           + jnp.dot(att_a * eneigh, scat_a_ref[...], preferred_element_type=f32))
    # TODO(synk): present a lane-dense (TB*D/128, 128) output view when D<128.
    o_ref[...] = out.astype(o_ref.dtype)


# ----------------------------------------------------------------------------
# Batch-tile selection from a VMEM budget
# ----------------------------------------------------------------------------
def _choose_tb(bp0, h, a, d, n, budget_bytes):
    hdp = _round_up(h * d, 128)
    adp = _round_up(a * d, 128)
    dp = _round_up(d, 128)
    np_ = _round_up(n, 128)
    # f32 elements resident per batch row: double-buffered streamed blocks,
    # in-kernel lane-dense temps, and the (N, Npad) pairwise Gumbel-rank temp.
    stream = 2 * (2 * dp + 2 * hdp + adp + np_) + 2 * dp
    temps = 6 * (hdp + adp) + 8 * np_ + 2 * dp
    rank = _round_up(n, 8) * np_
    per_row_bytes = 4 * (stream + temps + rank)
    tb_cap = max(8, (budget_bytes // per_row_bytes) // 8 * 8)
    tb_cap = min(tb_cap, 512)
    steps = max(1, -(-bp0 // tb_cap))
    if bp0 >= 16:
        steps = max(steps, 2)          # keep >=2 grid steps (v7x dual TensorCore)
    tb = _round_up(-(-bp0 // steps), 8)
    return max(8, min(tb, bp0))


# ----------------------------------------------------------------------------
# Wrapper: builds the constant segment/tile matrices and calls the kernel
# ----------------------------------------------------------------------------
def node_aggregate(self_feats, target_feats, e_hist, e_r_hist, e_neigh,
                   lin_w, lin_b, relation_att, r_token_emb, gumbel, k_select,
                   vmem_budget_bytes=20 * 1024 * 1024):
    B, H, D = e_hist.shape
    A = e_neigh.shape[1]
    N = H + A
    HD, AD = H * D, A * D
    f32 = jnp.float32

    # lane-dense slabs (free row-major reshapes of the gathered embeddings)
    # TODO(synk): consider streaming these slabs in bfloat16 (cast in-kernel)
    # to halve HBM traffic; distance/softmax math would stay f32.
    ehist_s = e_hist.reshape(B, HD).astype(f32)
    erhist_s = e_r_hist.reshape(B, HD).astype(f32)
    eneigh_s = e_neigh.reshape(B, AD).astype(f32)
    selff = self_feats.astype(f32)
    tgtf = target_feats.astype(f32)
    gum = gumbel.astype(f32)

    bp0 = _round_up(B, 8)
    TB = _choose_tb(bp0, H, A, D, N, vmem_budget_bytes)
    Bp = _round_up(B, TB)
    pad = Bp - B
    if pad:
        selff = jnp.pad(selff, ((0, pad), (0, 0)))
        tgtf = jnp.pad(tgtf, ((0, pad), (0, 0)))
        ehist_s = jnp.pad(ehist_s, ((0, pad), (0, 0)))
        erhist_s = jnp.pad(erhist_s, ((0, pad), (0, 0)))
        eneigh_s = jnp.pad(eneigh_s, ((0, pad), (0, 0)))
        gum = jnp.pad(gum, ((0, pad), (0, 0)))

    # split Linear(cat(self,target)) weights (no concat of the inputs)
    wself_t = lin_w[:, :D].T.astype(f32)                     # (D, D)
    wtgt_t = lin_w[:, D:].T.astype(f32)                      # (D, D)
    bias = lin_b.reshape(1, D).astype(f32)

    # constant 0/1 matrices: q->slab tiling, slab->per-neighbor segment sums,
    # att->slab expansion, slab->D scatter sums (all consumed by the idle MXU)
    eye_d = jnp.eye(D, dtype=f32)
    tile_h = jnp.tile(eye_d, (1, H))                         # (D, H*D)
    tile_a = jnp.tile(eye_d, (1, A))                         # (D, A*D)
    scat_h = tile_h.T                                        # (H*D, D)
    scat_a = tile_a.T                                        # (A*D, D)
    seg_h = jnp.repeat(jnp.eye(H, N, dtype=f32), D, axis=0)          # (H*D, N)
    seg_a = jnp.repeat(jnp.eye(A, N, k=H, dtype=f32), D, axis=0)     # (A*D, N)
    segT_h = seg_h.T                                         # (N, H*D)
    segT_a = seg_a.T                                         # (N, A*D)

    w1 = relation_att[:D].astype(f32)
    w2 = relation_att[D:].astype(f32)
    wslab_h = jnp.stack([jnp.tile(w1, H), jnp.tile(w2, H)], axis=0)   # (2, H*D)
    w1slab_a = jnp.tile(w1, A).reshape(1, AD)                         # (1, A*D)
    # adjacency relation embedding is the constant relation_token row ->
    # its contribution to the relation score is a per-column constant bias.
    s_bias = jnp.concatenate(
        [jnp.zeros((H,), f32),
         jnp.full((A,), jnp.dot(r_token_emb.astype(f32), w2), f32)]).reshape(1, N)

    batch_specs = [
        pl.BlockSpec((TB, D), lambda i: (i, 0)),     # self_feats
        pl.BlockSpec((TB, D), lambda i: (i, 0)),     # target_feats
        pl.BlockSpec((TB, HD), lambda i: (i, 0)),    # e_hist slab
        pl.BlockSpec((TB, HD), lambda i: (i, 0)),    # e_r history slab
        pl.BlockSpec((TB, AD), lambda i: (i, 0)),    # e_neigh slab
        pl.BlockSpec((TB, N), lambda i: (i, 0)),     # gumbel noise
    ]
    const_shapes = [(D, D), (D, D), (1, D), (D, HD), (D, AD), (HD, N), (AD, N),
                    (N, HD), (N, AD), (HD, D), (AD, D), (2, HD), (1, AD), (1, N)]
    const_specs = [pl.BlockSpec(s, lambda i: (0, 0)) for s in const_shapes]

    kernel = functools.partial(_node_agg_kernel, k_select=k_select)
    out = pl.pallas_call(
        kernel,
        out_shape=jax.ShapeDtypeStruct((Bp, D), f32),
        grid=(Bp // TB,),
        in_specs=batch_specs + const_specs,
        out_specs=pl.BlockSpec((TB, D), lambda i: (i, 0)),
        compiler_params=pltpu.CompilerParams(
            dimension_semantics=("parallel",),
            vmem_limit_bytes=32 * 1024 * 1024),
    )(selff, tgtf, ehist_s, erhist_s, eneigh_s, gum,
      wself_t, wtgt_t, bias, tile_h, tile_a, seg_h, seg_a,
      segT_h, segT_a, scat_h, scat_a, wslab_h, w1slab_a, s_bias)
    return out[:B]


# ----------------------------------------------------------------------------
# Full forward (mirrors Node_Aggregator.forward)
# ----------------------------------------------------------------------------
def node_aggregator_forward(params, self_feats, target_feats, history_uv,
                            history_r, adj, uv, percent, rng_key):
    u2e, v2e, r2e = params["u2e"], params["v2e"], params["r2e"]
    relation_token = params["relation_token"]

    B, H = history_uv.shape
    A = adj.shape[1]
    N = H + A

    # embedding gathers (glue; plain JAX indexing)
    # TODO(synk): longer term, fuse these gathers into the kernel via scalar
    # prefetch + memory_space=pl.ANY to avoid the HBM round-trip.
    if uv:
        e_hist = u2e[history_uv]                              # (B, H, D)
        e_neigh = v2e[adj]                                    # (B, A, D)
    else:
        e_hist = v2e[history_uv]
        e_neigh = u2e[adj]
    e_r_hist = r2e[history_r]                                 # (B, H, D)
    r_token_emb = r2e[relation_token]                         # (D,)

    k_select = max(1, int(percent * N))
    gumbel = jax.random.gumbel(rng_key, (B, N), dtype=jnp.float32)

    return node_aggregate(self_feats, target_feats, e_hist, e_r_hist, e_neigh,
                          params["lin_w"], params["lin_b"],
                          params["relation_att"], r_token_emb, gumbel, k_select)


# ----------------------------------------------------------------------------
# Pure-JAX reference (same Gumbel noise -> same selected set)
# ----------------------------------------------------------------------------
def _reference(self_feats, target_feats, e_hist, e_r_hist, e_neigh, lin_w,
               lin_b, relation_att, r_token_emb, gumbel, k_select):
    D = e_hist.shape[-1]
    x = jnp.concatenate([self_feats, target_feats], axis=-1)
    q = x @ lin_w.T + lin_b
    e_uv = jnp.concatenate([e_hist, e_neigh], axis=1)
    e_r = jnp.concatenate(
        [e_r_hist, jnp.broadcast_to(r_token_emb, e_neigh.shape)], axis=1)
    dist = -jnp.linalg.norm(e_uv - q[:, None, :], axis=-1)
    key = dist + gumbel
    thr = jnp.sort(key, axis=-1)[:, -k_select][:, None]
    mask = key >= thr
    w1, w2 = relation_att[:D], relation_att[D:]
    s = (e_uv * w1).sum(-1) + (e_r * w2).sum(-1)
    s = jnp.where(mask, s, -jnp.inf)
    att = jnp.where(mask, jax.nn.softmax(s, axis=-1), 0.0)
    return (att[:, :, None] * e_uv).sum(1)


# ----------------------------------------------------------------------------
if __name__ == "__main__":
    B = 2            # number of nodes aggregated (len(history_uv))
    D = 32           # embed_dim
    H = 16           # history interactions per node
    A = 8            # adjacency neighbors per node
    NUM_USERS, NUM_ITEMS, NUM_REL = 50, 60, 5
    RELATION_TOKEN = NUM_REL - 1
    PERCENT = 0.5

    root = jax.random.PRNGKey(0)
    ks = jax.random.split(root, 12)

    params = {
        "u2e": jax.random.normal(ks[0], (NUM_USERS, D), jnp.float32),
        "v2e": jax.random.normal(ks[1], (NUM_ITEMS, D), jnp.float32),
        "r2e": jax.random.normal(ks[2], (NUM_REL, D), jnp.float32),
        "relation_att": jax.random.normal(ks[3], (2 * D,), jnp.float32),
        "lin_w": jax.random.normal(ks[4], (D, 2 * D), jnp.float32)
                 * (1.0 / jnp.sqrt(2.0 * D)),
        "lin_b": jax.random.normal(ks[5], (D,), jnp.float32) * 0.01,
        "relation_token": RELATION_TOKEN,
    }

    self_feats = jax.random.normal(ks[6], (B, D), jnp.float32)
    target_feats = jax.random.normal(ks[7], (B, D), jnp.float32)
    history_uv = jax.random.randint(ks[8], (B, H), 0, NUM_USERS, jnp.int32)
    history_r = jax.random.randint(ks[9], (B, H), 0, NUM_REL - 1, jnp.int32)
    adj = jax.random.randint(ks[10], (B, A), 0, NUM_ITEMS, jnp.int32)

    to_feats = node_aggregator_forward(
        params, self_feats, target_feats, history_uv, history_r, adj,
        uv=True, percent=PERCENT, rng_key=ks[11])
    to_feats = jax.block_until_ready(to_feats)

    assert to_feats.shape == (B, D)
    assert bool(jnp.all(jnp.isfinite(to_feats)))

    # reference check with the same Gumbel noise (tolerance covers the
    # approximate reciprocal and MXU-vs-VPU summation order)
    N = H + A
    e_hist = params["u2e"][history_uv]
    e_neigh = params["v2e"][adj]
    e_r_hist = params["r2e"][history_r]
    r_tok = params["r2e"][RELATION_TOKEN]
    gumbel = jax.random.gumbel(ks[11], (B, N), dtype=jnp.float32)
    ref = _reference(self_feats, target_feats, e_hist, e_r_hist, e_neigh,
                     params["lin_w"], params["lin_b"], params["relation_att"],
                     r_tok, gumbel, max(1, int(PERCENT * N)))
    assert bool(jnp.allclose(to_feats, ref, rtol=3e-2, atol=3e-2))

    print("KERNEL_OK")
</pallas_src>

<mosaic_0001>
module attributes {stable_mosaic.version = 11 : i64} {
  func.func @_node_agg_kernel(%arg0: i32, %arg1: memref<8x32xf32, #tpu.memory_space<vmem>>, %arg2: memref<8x32xf32, #tpu.memory_space<vmem>>, %arg3: memref<8x512xf32, #tpu.memory_space<vmem>>, %arg4: memref<8x512xf32, #tpu.memory_space<vmem>>, %arg5: memref<8x256xf32, #tpu.memory_space<vmem>>, %arg6: memref<8x24xf32, #tpu.memory_space<vmem>>, %arg7: memref<32x32xf32, #tpu.memory_space<vmem>>, %arg8: memref<32x32xf32, #tpu.memory_space<vmem>>, %arg9: memref<1x32xf32, #tpu.memory_space<vmem>>, %arg10: memref<32x512xf32, #tpu.memory_space<vmem>>, %arg11: memref<32x256xf32, #tpu.memory_space<vmem>>, %arg12: memref<512x24xf32, #tpu.memory_space<vmem>>, %arg13: memref<256x24xf32, #tpu.memory_space<vmem>>, %arg14: memref<24x512xf32, #tpu.memory_space<vmem>>, %arg15: memref<24x256xf32, #tpu.memory_space<vmem>>, %arg16: memref<512x32xf32, #tpu.memory_space<vmem>>, %arg17: memref<256x32xf32, #tpu.memory_space<vmem>>, %arg18: memref<2x512xf32, #tpu.memory_space<vmem>>, %arg19: memref<1x256xf32, #tpu.memory_space<vmem>>, %arg20: memref<1x24xf32, #tpu.memory_space<vmem>>, %arg21: memref<8x32xf32, #tpu.memory_space<vmem>>) attributes {dimension_semantics = [#tpu.dimension_semantics<parallel>], iteration_bounds = array<i64: 1>, scalar_prefetch = 0 : i64, scratch_operands = 0 : i64, tpu.core_type = #tpu.core_type<tc>, window_params = [{transform_indices = @transform_0, window_bounds = array<i64: 8, 32>}, {transform_indices = @transform_1, window_bounds = array<i64: 8, 32>}, {transform_indices = @transform_2, window_bounds = array<i64: 8, 512>}, {transform_indices = @transform_3, window_bounds = array<i64: 8, 512>}, {transform_indices = @transform_4, window_bounds = array<i64: 8, 256>}, {transform_indices = @transform_5, window_bounds = array<i64: 8, 24>}, {pipeline_mode = #tpu.pipeline_mode<synchronous>, transform_indices = @transform_6, window_bounds = array<i64: 32, 32>}, {pipeline_mode = #tpu.pipeline_mode<synchronous>, transform_indices = @transform_7, window_bounds = array<i64: 32, 32>}, {pipeline_mode = #tpu.pipeline_mode<synchronous>, transform_indices = @transform_8, window_bounds = array<i64: 1, 32>}, {pipeline_mode = #tpu.pipeline_mode<synchronous>, transform_indices = @transform_9, window_bounds = array<i64: 32, 512>}, {pipeline_mode = #tpu.pipeline_mode<synchronous>, transform_indices = @transform_10, window_bounds = array<i64: 32, 256>}, {pipeline_mode = #tpu.pipeline_mode<synchronous>, transform_indices = @transform_11, window_bounds = array<i64: 512, 24>}, {pipeline_mode = #tpu.pipeline_mode<synchronous>, transform_indices = @transform_12, window_bounds = array<i64: 256, 24>}, {pipeline_mode = #tpu.pipeline_mode<synchronous>, transform_indices = @transform_13, window_bounds = array<i64: 24, 512>}, {pipeline_mode = #tpu.pipeline_mode<synchronous>, transform_indices = @transform_14, window_bounds = array<i64: 24, 256>}, {pipeline_mode = #tpu.pipeline_mode<synchronous>, transform_indices = @transform_15, window_bounds = array<i64: 512, 32>}, {pipeline_mode = #tpu.pipeline_mode<synchronous>, transform_indices = @transform_16, window_bounds = array<i64: 256, 32>}, {pipeline_mode = #tpu.pipeline_mode<synchronous>, transform_indices = @transform_17, window_bounds = array<i64: 2, 512>}, {pipeline_mode = #tpu.pipeline_mode<synchronous>, transform_indices = @transform_18, window_bounds = array<i64: 1, 256>}, {pipeline_mode = #tpu.pipeline_mode<synchronous>, transform_indices = @transform_19, window_bounds = array<i64: 1, 24>}, {transform_indices = @transform_20, window_bounds = array<i64: 8, 32>}]} {
    %c0 = arith.constant 0 : index
    %c0_0 = arith.constant 0 : index
    %0 = vector.load %arg3[%c0, %c0_0] : memref<8x512xf32, #tpu.memory_space<vmem>>, vector<8x512xf32>
    %c0_1 = arith.constant 0 : index
    %c0_2 = arith.constant 0 : index
    %1 = vector.load %arg4[%c0_1, %c0_2] : memref<8x512xf32, #tpu.memory_space<vmem>>, vector<8x512xf32>
    %c0_3 = arith.constant 0 : index
    %c0_4 = arith.constant 0 : index
    %2 = vector.load %arg5[%c0_3, %c0_4] : memref<8x256xf32, #tpu.memory_space<vmem>>, vector<8x256xf32>
    %c0_5 = arith.constant 0 : index
    %c0_6 = arith.constant 0 : index
    %3 = vector.load %arg1[%c0_5, %c0_6] : memref<8x32xf32, #tpu.memory_space<vmem>>, vector<8x32xf32>
    %c0_7 = arith.constant 0 : index
    %c0_8 = arith.constant 0 : index
    %4 = vector.load %arg7[%c0_7, %c0_8] : memref<32x32xf32, #tpu.memory_space<vmem>>, vector<32x32xf32>
    %cst = arith.constant dense<0.000000e+00> : vector<8x32xf32>
    %5 = tpu.matmul %3, %4, %cst {dimension_numbers = #tpu.dot_dimension_numbers<[1], [0], [0], [1], [0, 0, 1, 1], [], []>} : vector<8x32xf32>, vector<32x32xf32>, vector<8x32xf32> -> vector<8x32xf32>
    %c0_9 = arith.constant 0 : index
    %c0_10 = arith.constant 0 : index
    %6 = vector.load %arg2[%c0_9, %c0_10] : memref<8x32xf32, #tpu.memory_space<vmem>>, vector<8x32xf32>
    %c0_11 = arith.constant 0 : index
    %c0_12 = arith.constant 0 : index
    %7 = vector.load %arg8[%c0_11, %c0_12] : memref<32x32xf32, #tpu.memory_space<vmem>>, vector<32x32xf32>
    %cst_13 = arith.constant dense<0.000000e+00> : vector<8x32xf32>
    %8 = tpu.matmul %6, %7, %cst_13 {dimension_numbers = #tpu.dot_dimension_numbers<[1], [0], [0], [1], [0, 0, 1, 1], [], []>} : vector<8x32xf32>, vector<32x32xf32>, vector<8x32xf32> -> vector<8x32xf32>
    %9 = arith.addf %5, %8 : vector<8x32xf32>
    %c0_14 = arith.constant 0 : index
    %c0_15 = arith.constant 0 : index
    %10 = vector.load %arg9[%c0_14, %c0_15] : memref<1x32xf32, #tpu.memory_space<vmem>>, vector<1x32xf32>
    %11 = vector.broadcast %10 : vector<1x32xf32> to vector<8x32xf32>
    %12 = arith.addf %9, %11 : vector<8x32xf32>
    %c0_16 = arith.constant 0 : index
    %c0_17 = arith.constant 0 : index
    %13 = vector.load %arg10[%c0_16, %c0_17] : memref<32x512xf32, #tpu.memory_space<vmem>>, vector<32x512xf32>
    %cst_18 = arith.constant dense<0.000000e+00> : vector<8x512xf32>
    %14 = tpu.matmul %12, %13, %cst_18 {dimension_numbers = #tpu.dot_dimension_numbers<[1], [0], [0], [1], [0, 0, 1, 1], [], []>} : vector<8x32xf32>, vector<32x512xf32>, vector<8x512xf32> -> vector<8x512xf32>
    %c0_19 = arith.constant 0 : index
    %c0_20 = arith.constant 0 : index
    %15 = vector.load %arg11[%c0_19, %c0_20] : memref<32x256xf32, #tpu.memory_space<vmem>>, vector<32x256xf32>
    %cst_21 = arith.constant dense<0.000000e+00> : vector<8x256xf32>
    %16 = tpu.matmul %12, %15, %cst_21 {dimension_numbers = #tpu.dot_dimension_numbers<[1], [0], [0], [1], [0, 0, 1, 1], [], []>} : vector<8x32xf32>, vector<32x256xf32>, vector<8x256xf32> -> vector<8x256xf32>
    %17 = arith.subf %0, %14 : vector<8x512xf32>
    %18 = arith.subf %2, %16 : vector<8x256xf32>
    %19 = arith.mulf %17, %17 : vector<8x512xf32>
    %c0_22 = arith.constant 0 : index
    %c0_23 = arith.constant 0 : index
    %20 = vector.load %arg12[%c0_22, %c0_23] : memref<512x24xf32, #tpu.memory_space<vmem>>, vector<512x24xf32>
    %cst_24 = arith.constant dense<0.000000e+00> : vector<8x24xf32>
    %21 = tpu.matmul %19, %20, %cst_24 {dimension_numbers = #tpu.dot_dimension_numbers<[1], [0], [0], [1], [0, 0, 1, 1], [], []>} : vector<8x512xf32>, vector<512x24xf32>, vector<8x24xf32> -> vector<8x24xf32>
    %22 = arith.mulf %18, %18 : vector<8x256xf32>
    %c0_25 = arith.constant 0 : index
    %c0_26 = arith.constant 0 : index
    %23 = vector.load %arg13[%c0_25, %c0_26] : memref<256x24xf32, #tpu.memory_space<vmem>>, vector<256x24xf32>
    %cst_27 = arith.constant dense<0.000000e+00> : vector<8x24xf32>
    %24 = tpu.matmul %22, %23, %cst_27 {dimension_numbers = #tpu.dot_dimension_numbers<[1], [0], [0], [1], [0, 0, 1, 1], [], []>} : vector<8x256xf32>, vector<256x24xf32>, vector<8x24xf32> -> vector<8x24xf32>
    %25 = arith.addf %21, %24 : vector<8x24xf32>
    %26 = math.sqrt %25 : vector<8x24xf32>
    %cst_28 = arith.constant 0.000000e+00 : f32
    %27 = vector.broadcast %cst_28 : f32 to vector<8x24xf32>
    %28 = arith.subf %27, %26 : vector<8x24xf32>
    %c0_29 = arith.constant 0 : index
    %c0_30 = arith.constant 0 : index
    %29 = vector.load %arg6[%c0_29, %c0_30] : memref<8x24xf32, #tpu.memory_space<vmem>>, vector<8x24xf32>
    %30 = arith.addf %28, %29 : vector<8x24xf32>
    %31 = vector.shape_cast %30 : vector<8x24xf32> to vector<8x1x24xf32>
    %32 = vector.shape_cast %30 : vector<8x24xf32> to vector<8x24x1xf32>
    %33 = vector.broadcast %31 : vector<8x1x24xf32> to vector<8x24x24xf32>
    %34 = vector.broadcast %32 : vector<8x24x1xf32> to vector<8x24x24xf32>
    %35 = arith.cmpf ogt, %33, %34 : vector<8x24x24xf32>
    %36 = arith.extui %35 : vector<8x24x24xi1> to vector<8x24x24xi32>
    %cst_31 = arith.constant dense<0> : vector<8x24xi32>
    %37 = vector.multi_reduction <add>, %36, %cst_31 [2] : vector<8x24x24xi32> to vector<8x24xi32>
    %c12_i32 = arith.constant 12 : i32
    %38 = vector.broadcast %c12_i32 : i32 to vector<8x24xi32>
    %39 = arith.cmpi slt, %37, %38 : vector<8x24xi32>
    %c0_32 = arith.constant 0 : index
    %c0_33 = arith.constant 0 : index
    %40 = vector.load %arg18[%c0_32, %c0_33] : memref<2x512xf32, #tpu.memory_space<vmem>>, vector<2x512xf32>
    %41 = vector.extract_strided_slice %40 {offsets = [0, 0], sizes = [1, 512], strides = [1, 1]} : vector<2x512xf32> to vector<1x512xf32>
    %42 = vector.extract_strided_slice %40 {offsets = [1, 0], sizes = [1, 512], strides = [1, 1]} : vector<2x512xf32> to vector<1x512xf32>
    %43 = vector.broadcast %41 : vector<1x512xf32> to vector<8x512xf32>
    %44 = arith.mulf %0, %43 : vector<8x512xf32>
    %45 = vector.broadcast %42 : vector<1x512xf32> to vector<8x512xf32>
    %46 = arith.mulf %1, %45 : vector<8x512xf32>
    %47 = arith.addf %44, %46 : vector<8x512xf32>
    %c0_34 = arith.constant 0 : index
    %c0_35 = arith.constant 0 : index
    %48 = vector.load %arg12[%c0_34, %c0_35] : memref<512x24xf32, #tpu.memory_space<vmem>>, vector<512x24xf32>
    %cst_36 = arith.constant dense<0.000000e+00> : vector<8x24xf32>
    %49 = tpu.matmul %47, %48, %cst_36 {dimension_numbers = #tpu.dot_dimension_numbers<[1], [0], [0], [1], [0, 0, 1, 1], [], []>} : vector<8x512xf32>, vector<512x24xf32>, vector<8x24xf32> -> vector<8x24xf32>
    %c0_37 = arith.constant 0 : index
    %c0_38 = arith.constant 0 : index
    %50 = vector.load %arg19[%c0_37, %c0_38] : memref<1x256xf32, #tpu.memory_space<vmem>>, vector<1x256xf32>
    %51 = vector.broadcast %50 : vector<1x256xf32> to vector<8x256xf32>
    %52 = arith.mulf %2, %51 : vector<8x256xf32>
    %c0_39 = arith.constant 0 : index
    %c0_40 = arith.constant 0 : index
    %53 = vector.load %arg13[%c0_39, %c0_40] : memref<256x24xf32, #tpu.memory_space<vmem>>, vector<256x24xf32>
    %cst_41 = arith.constant dense<0.000000e+00> : vector<8x24xf32>
    %54 = tpu.matmul %52, %53, %cst_41 {dimension_numbers = #tpu.dot_dimension_numbers<[1], [0], [0], [1], [0, 0, 1, 1], [], []>} : vector<8x256xf32>, vector<256x24xf32>, vector<8x24xf32> -> vector<8x24xf32>
    %55 = arith.addf %49, %54 : vector<8x24xf32>
    %c0_42 = arith.constant 0 : index
    %c0_43 = arith.constant 0 : index
    %56 = vector.load %arg20[%c0_42, %c0_43] : memref<1x24xf32, #tpu.memory_space<vmem>>, vector<1x24xf32>
    %57 = vector.broadcast %56 : vector<1x24xf32> to vector<8x24xf32>
    %58 = arith.addf %55, %57 : vector<8x24xf32>
    %cst_44 = arith.constant -1.000000e+30 : f32
    %59 = vector.broadcast %cst_44 : f32 to vector<8x24xf32>
    %60 = arith.select %39, %58, %59 : vector<8x24xi1>, vector<8x24xf32>
    %cst_45 = arith.constant dense<0xFF800000> : vector<8xf32>
    %61 = vector.multi_reduction <maximumf>, %60, %cst_45 [1] : vector<8x24xf32> to vector<8xf32>
    %62 = vector.shape_cast %61 : vector<8xf32> to vector<8x1xf32>
    %63 = vector.broadcast %62 : vector<8x1xf32> to vector<8x24xf32>
    %64 = arith.subf %60, %63 : vector<8x24xf32>
    %65 = math.exp %64 : vector<8x24xf32>
    %66 = arith.extui %39 : vector<8x24xi1> to vector<8x24xi32>
    %67 = arith.sitofp %66 : vector<8x24xi32> to vector<8x24xf32>
    %68 = arith.mulf %65, %67 : vector<8x24xf32>
    %cst_46 = arith.constant dense<0.000000e+00> : vector<8xf32>
    %69 = vector.multi_reduction <add>, %68, %cst_46 [1] : vector<8x24xf32> to vector<8xf32>
    %70 = vector.shape_cast %69 : vector<8xf32> to vector<8x1xf32>
    %71 = tpu.reciprocal %70 {approx = true} : vector<8x1xf32> -> vector<8x1xf32>
    %72 = vector.broadcast %71 : vector<8x1xf32> to vector<8x24xf32>
    %73 = arith.mulf %68, %72 : vector<8x24xf32>
    %c0_47 = arith.constant 0 : index
    %c0_48 = arith.constant 0 : index
    %74 = vector.load %arg14[%c0_47, %c0_48] : memref<24x512xf32, #tpu.memory_space<vmem>>, vector<24x512xf32>
    %cst_49 = arith.constant dense<0.000000e+00> : vector<8x512xf32>
    %75 = tpu.matmul %73, %74, %cst_49 {dimension_numbers = #tpu.dot_dimension_numbers<[1], [0], [0], [1], [0, 0, 1, 1], [], []>} : vector<8x24xf32>, vector<24x512xf32>, vector<8x512xf32> -> vector<8x512xf32>
    %c0_50 = arith.constant 0 : index
    %c0_51 = arith.constant 0 : index
    %76 = vector.load %arg15[%c0_50, %c0_51] : memref<24x256xf32, #tpu.memory_space<vmem>>, vector<24x256xf32>
    %cst_52 = arith.constant dense<0.000000e+00> : vector<8x256xf32>
    %77 = tpu.matmul %73, %76, %cst_52 {dimension_numbers = #tpu.dot_dimension_numbers<[1], [0], [0], [1], [0, 0, 1, 1], [], []>} : vector<8x24xf32>, vector<24x256xf32>, vector<8x256xf32> -> vector<8x256xf32>
    %78 = arith.mulf %75, %0 : vector<8x512xf32>
    %c0_53 = arith.constant 0 : index
    %c0_54 = arith.constant 0 : index
    %79 = vector.load %arg16[%c0_53, %c0_54] : memref<512x32xf32, #tpu.memory_space<vmem>>, vector<512x32xf32>
    %cst_55 = arith.constant dense<0.000000e+00> : vector<8x32xf32>
    %80 = tpu.matmul %78, %79, %cst_55 {dimension_numbers = #tpu.dot_dimension_numbers<[1], [0], [0], [1], [0, 0, 1, 1], [], []>} : vector<8x512xf32>, vector<512x32xf32>, vector<8x32xf32> -> vector<8x32xf32>
    %81 = arith.mulf %77, %2 : vector<8x256xf32>
    %c0_56 = arith.constant 0 : index
    %c0_57 = arith.constant 0 : index
    %82 = vector.load %arg17[%c0_56, %c0_57] : memref<256x32xf32, #tpu.memory_space<vmem>>, vector<256x32xf32>
    %cst_58 = arith.constant dense<0.000000e+00> : vector<8x32xf32>
    %83 = tpu.matmul %81, %82, %cst_58 {dimension_numbers = #tpu.dot_dimension_numbers<[1], [0], [0], [1], [0, 0, 1, 1], [], []>} : vector<8x256xf32>, vector<256x32xf32>, vector<8x32xf32> -> vector<8x32xf32>
    %84 = arith.addf %80, %83 : vector<8x32xf32>
    %c0_59 = arith.constant 0 : index
    %c0_60 = arith.constant 0 : index
    %85 = vector.load %arg21[%c0_59, %c0_60] : memref<8x32xf32, #tpu.memory_space<vmem>>, vector<8x32xf32>
    tpu.vector_store %arg21[%c0_59, %c0_60], %84 {strides = array<i32>} : memref<8x32xf32, #tpu.memory_space<vmem>>, vector<8x32xf32>,
    return
  }
  func.func @transform_0(%arg0: i32) -> (i32, i32) {
    %c0_i32 = arith.constant 0 : i32
    %c0_i32_0 = arith.constant 0 : i32
    return %arg0, %c0_i32 : i32, i32
  }
  func.func @transform_1(%arg0: i32) -> (i32, i32) {
    %c0_i32 = arith.constant 0 : i32
    %c0_i32_0 = arith.constant 0 : i32
    return %arg0, %c0_i32 : i32, i32
  }
  func.func @transform_2(%arg0: i32) -> (i32, i32) {
    %c0_i32 = arith.constant 0 : i32
    %c0_i32_0 = arith.constant 0 : i32
    return %arg0, %c0_i32 : i32, i32
  }
  func.func @transform_3(%arg0: i32) -> (i32, i32) {
    %c0_i32 = arith.constant 0 : i32
    %c0_i32_0 = arith.constant 0 : i32
    return %arg0, %c0_i32 : i32, i32
  }
  func.func @transform_4(%arg0: i32) -> (i32, i32) {
    %c0_i32 = arith.constant 0 : i32
    %c0_i32_0 = arith.constant 0 : i32
    return %arg0, %c0_i32 : i32, i32
  }
  func.func @transform_5(%arg0: i32) -> (i32, i32) {
    %c0_i32 = arith.constant 0 : i32
    %c0_i32_0 = arith.constant 0 : i32
    return %arg0, %c0_i32 : i32, i32
  }
  func.func @transform_6(%arg0: i32) -> (i32, i32) {
    %c0_i32 = arith.constant 0 : i32
    %c0_i32_0 = arith.constant 0 : i32
    %c0_i32_1 = arith.constant 0 : i32
    return %c0_i32, %c0_i32_0 : i32, i32
  }
  func.func @transform_7(%arg0: i32) -> (i32, i32) {
    %c0_i32 = arith.constant 0 : i32
    %c0_i32_0 = arith.constant 0 : i32
    %c0_i32_1 = arith.constant 0 : i32
    return %c0_i32, %c0_i32_0 : i32, i32
  }
  func.func @transform_8(%arg0: i32) -> (i32, i32) {
    %c0_i32 = arith.constant 0 : i32
    %c0_i32_0 = arith.constant 0 : i32
    %c0_i32_1 = arith.constant 0 : i32
    return %c0_i32, %c0_i32_0 : i32, i32
  }
  func.func @transform_9(%arg0: i32) -> (i32, i32) {
    %c0_i32 = arith.constant 0 : i32
    %c0_i32_0 = arith.constant 0 : i32
    %c0_i32_1 = arith.constant 0 : i32
    return %c0_i32, %c0_i32_0 : i32, i32
  }
  func.func @transform_10(%arg0: i32) -> (i32, i32) {
    %c0_i32 = arith.constant 0 : i32
    %c0_i32_0 = arith.constant 0 : i32
    %c0_i32_1 = arith.constant 0 : i32
    return %c0_i32, %c0_i32_0 : i32, i32
  }
  func.func @transform_11(%arg0: i32) -> (i32, i32) {
    %c0_i32 = arith.constant 0 : i32
    %c0_i32_0 = arith.constant 0 : i32
    %c0_i32_1 = arith.constant 0 : i32
    return %c0_i32, %c0_i32_0 : i32, i32
  }
  func.func @transform_12(%arg0: i32) -> (i32, i32) {
    %c0_i32 = arith.constant 0 : i32
    %c0_i32_0 = arith.constant 0 : i32
    %c0_i32_1 = arith.constant 0 : i32
    return %c0_i32, %c0_i32_0 : i32, i32
  }
  func.func @transform_13(%arg0: i32) -> (i32, i32) {
    %c0_i32 = arith.constant 0 : i32
    %c0_i32_0 = arith.constant 0 : i32
    %c0_i32_1 = arith.constant 0 : i32
    return %c0_i32, %c0_i32_0 : i32, i32
  }
  func.func @transform_14(%arg0: i32) -> (i32, i32) {
    %c0_i32 = arith.constant 0 : i32
    %c0_i32_0 = arith.constant 0 : i32
    %c0_i32_1 = arith.constant 0 : i32
    return %c0_i32, %c0_i32_0 : i32, i32
  }
  func.func @transform_15(%arg0: i32) -> (i32, i32) {
    %c0_i32 = arith.constant 0 : i32
    %c0_i32_0 = arith.constant 0 : i32
    %c0_i32_1 = arith.constant 0 : i32
    return %c0_i32, %c0_i32_0 : i32, i32
  }
  func.func @transform_16(%arg0: i32) -> (i32, i32) {
    %c0_i32 = arith.constant 0 : i32
    %c0_i32_0 = arith.constant 0 : i32
    %c0_i32_1 = arith.constant 0 : i32
    return %c0_i32, %c0_i32_0 : i32, i32
  }
  func.func @transform_17(%arg0: i32) -> (i32, i32) {
    %c0_i32 = arith.constant 0 : i32
    %c0_i32_0 = arith.constant 0 : i32
    %c0_i32_1 = arith.constant 0 : i32
    return %c0_i32, %c0_i32_0 : i32, i32
  }
  func.func @transform_18(%arg0: i32) -> (i32, i32) {
    %c0_i32 = arith.constant 0 : i32
    %c0_i32_0 = arith.constant 0 : i32
    %c0_i32_1 = arith.constant 0 : i32
    return %c0_i32, %c0_i32_0 : i32, i32
  }
  func.func @transform_19(%arg0: i32) -> (i32, i32) {
    %c0_i32 = arith.constant 0 : i32
    %c0_i32_0 = arith.constant 0 : i32
    %c0_i32_1 = arith.constant 0 : i32
    return %c0_i32, %c0_i32_0 : i32, i32
  }
  func.func @transform_20(%arg0: i32) -> (i32, i32) {
    %c0_i32 = arith.constant 0 : i32
    %c0_i32_0 = arith.constant 0 : i32
    return %arg0, %c0_i32 : i32, i32
  }
}

</mosaic_0001>

<llo_original>
// kernel: tpu_custom_call.1
$region0: #{tpu_custom_call.1}
  #allocation0 [shape = 'u32[]', space=smem, size = 0x4, offset = 0x4, fixed_abs, tag = 'smem constant byte address 0x4 - core index']
  #allocation1 [shape = 'u32[72,128]{1,0:T(1,128)}', space=vmem, size = 0x9000, scoped, tag = 'internal scratch']
  %s0 = inlined_call_operand.vmem [shape: f32[8,32], index: 0, kind: input, shape index: {}]
  %s1 = inlined_call_operand.vmem [shape: f32[8,32], index: 1, kind: input, shape index: {}]
  %s2 = inlined_call_operand.vmem [shape: f32[8,512], index: 2, kind: input, shape index: {}]
  %s3 = inlined_call_operand.vmem [shape: f32[8,512], index: 3, kind: input, shape index: {}]
  %s4 = inlined_call_operand.vmem [shape: f32[8,256], index: 4, kind: input, shape index: {}]
  %s5 = inlined_call_operand.vmem [shape: f32[8,24], index: 5, kind: input, shape index: {}]
  %s6 = inlined_call_operand.vmem [shape: f32[32,32], index: 6, kind: input, shape index: {}]
  %s7 = inlined_call_operand.vmem [shape: f32[32,32], index: 7, kind: input, shape index: {}]
  %s8 = inlined_call_operand.vmem [shape: f32[1,32], index: 8, kind: input, shape index: {}]
  %s9 = inlined_call_operand.vmem [shape: f32[32,512], index: 9, kind: input, shape index: {}]
  %s10 = inlined_call_operand.vmem [shape: f32[32,256], index: 10, kind: input, shape index: {}]
  %s11 = inlined_call_operand.vmem [shape: f32[512,24], index: 11, kind: input, shape index: {}]
  %s12 = inlined_call_operand.vmem [shape: f32[256,24], index: 12, kind: input, shape index: {}]
  %s13 = inlined_call_operand.vmem [shape: f32[24,512], index: 13, kind: input, shape index: {}]
  %s14 = inlined_call_operand.vmem [shape: f32[24,256], index: 14, kind: input, shape index: {}]
  %s15 = inlined_call_operand.vmem [shape: f32[512,32], index: 15, kind: input, shape index: {}]
  %s16 = inlined_call_operand.vmem [shape: f32[256,32], index: 16, kind: input, shape index: {}]
  %s17 = inlined_call_operand.vmem [shape: f32[2,512], index: 17, kind: input, shape index: {}]
  %s18 = inlined_call_operand.vmem [shape: f32[1,256], index: 18, kind: input, shape index: {}]
  %s19 = inlined_call_operand.vmem [shape: f32[1,24], index: 19, kind: input, shape index: {}]
  %s20 = inlined_call_operand.hbm [shape: f32[8,32], index: 20, kind: output, shape index: {}]
  %s21 = sld [smem:[#allocation0]]
  $region90: #{tpu_custom_call.1} parent=0
    _
  %s23 = ssub.s32 1, %s21
  %s24 = scalar_select 0, %s23, %s21
  $region1: #{tpu_custom_call.1} parent=0
    #allocation2 [shape = 'u8[4096]{0}', space=vmem, size = 0x1000, scoped, tag = 'output window, operand 0, single buffered']
    #allocation3 [shape = 's32[1]{0}', space=sflag, size = 0x4, scoped, tag = 'scoped memory for tpu_custom_call.1']
    %25 = vsyncpa [#allocation3], 0
    // Predicated region
    $region2: #{tpu_custom_call.1} parent=1 // pred_check
      _
    $region3: #{tpu_custom_call.1} parent=1 // pred_check_branch
      %27 = sbr.rel (0) target = $region5
    $region4: #{tpu_custom_call.1} parent=1 // pred_region
      _
    $region5: #{tpu_custom_call.1} parent=1 // pred_fallthru
      _
    // Predicated region
    $region6: #{tpu_custom_call.1} parent=1 // pred_check
      _
    $region7: #{tpu_custom_call.1} parent=1 // pred_check_branch
      %29 = sbr.rel (0) target = $region9
    $region8: #{tpu_custom_call.1} parent=1 // pred_region
      _
    $region9: #{tpu_custom_call.1} parent=1 // pred_fallthru
      _
    // Predicated region
    $region10: #{tpu_custom_call.1} parent=1 // pred_check
      _
    $region11: #{tpu_custom_call.1} parent=1 // pred_check_branch
      %31 = sbr.rel (0) target = $region13
    $region12: #{tpu_custom_call.1} parent=1 // pred_region
      _
    $region13: #{tpu_custom_call.1} parent=1 // pred_fallthru
      _
    // Predicated region
    $region14: #{tpu_custom_call.1} parent=1 // pred_check
      _
    $region15: #{tpu_custom_call.1} parent=1 // pred_check_branch
      %33 = sbr.rel (0) target = $region17
    $region16: #{tpu_custom_call.1} parent=1 // pred_region
      _
    $region17: #{tpu_custom_call.1} parent=1 // pred_fallthru
      _
    // Predicated region
    $region18: #{tpu_custom_call.1} parent=1 // pred_check
      _
    $region19: #{tpu_custom_call.1} parent=1 // pred_check_branch
      %35 = sbr.rel (0) target = $region21
    $region20: #{tpu_custom_call.1} parent=1 // pred_region
      _
    $region21: #{tpu_custom_call.1} parent=1 // pred_fallthru
      _
    // Predicated region
    $region22: #{tpu_custom_call.1} parent=1 // pred_check
      _
    $region23: #{tpu_custom_call.1} parent=1 // pred_check_branch
      %37 = sbr.rel (0) target = $region25
    $region24: #{tpu_custom_call.1} parent=1 // pred_region
      _
    $region25: #{tpu_custom_call.1} parent=1 // pred_fallthru
      _
    // Predicated region
    $region26: #{tpu_custom_call.1} parent=1 // pred_check
      _
    $region27: #{tpu_custom_call.1} parent=1 // pred_check_branch
      %39 = sbr.rel (0) target = $region29
    $region28: #{tpu_custom_call.1} parent=1 // pred_region
      _
    $region29: #{tpu_custom_call.1} parent=1 // pred_fallthru
      _
    // Predicated region
    $region30: #{tpu_custom_call.1} parent=1 // pred_check
      _
    $region31: #{tpu_custom_call.1} parent=1 // pred_check_branch
      %41 = sbr.rel (0) target = $region33
    $region32: #{tpu_custom_call.1} parent=1 // pred_region
      _
    $region33: #{tpu_custom_call.1} parent=1 // pred_fallthru
      _
    // Predicated region
    $region34: #{tpu_custom_call.1} parent=1 // pred_check
      _
    $region35: #{tpu_custom_call.1} parent=1 // pred_check_branch
      %43 = sbr.rel (0) target = $region37
    $region36: #{tpu_custom_call.1} parent=1 // pred_region
      _
    $region37: #{tpu_custom_call.1} parent=1 // pred_fallthru
      _
    // Predicated region
    $region38: #{tpu_custom_call.1} parent=1 // pred_check
      _
    $region39: #{tpu_custom_call.1} parent=1 // pred_check_branch
      %45 = sbr.rel (0) target = $region41
    $region40: #{tpu_custom_call.1} parent=1 // pred_region
      _
    $region41: #{tpu_custom_call.1} parent=1 // pred_fallthru
      _
    // Predicated region
    $region42: #{tpu_custom_call.1} parent=1 // pred_check
      _
    $region43: #{tpu_custom_call.1} parent=1 // pred_check_branch
      %47 = sbr.rel (0) target = $region45
    $region44: #{tpu_custom_call.1} parent=1 // pred_region
      _
    $region45: #{tpu_custom_call.1} parent=1 // pred_fallthru
      _
    // Predicated region
    $region46: #{tpu_custom_call.1} parent=1 // pred_check
      _
    $region47: #{tpu_custom_call.1} parent=1 // pred_check_branch
      %49 = sbr.rel (0) target = $region49
    $region48: #{tpu_custom_call.1} parent=1 // pred_region
      _
    $region49: #{tpu_custom_call.1} parent=1 // pred_fallthru
      _
    // Predicated region
    $region50: #{tpu_custom_call.1} parent=1 // pred_check
      _
    $region51: #{tpu_custom_call.1} parent=1 // pred_check_branch
      %51 = sbr.rel (0) target = $region53
    $region52: #{tpu_custom_call.1} parent=1 // pred_region
      _
    $region53: #{tpu_custom_call.1} parent=1 // pred_fallthru
      _
    // Predicated region
    $region54: #{tpu_custom_call.1} parent=1 // pred_check
      _
    $region55: #{tpu_custom_call.1} parent=1 // pred_check_branch
      %53 = sbr.rel (0) target = $region57
    $region56: #{tpu_custom_call.1} parent=1 // pred_region
      _
    $region57: #{tpu_custom_call.1} parent=1 // pred_fallthru
      _
    // Predicated region
    $region58: #{tpu_custom_call.1} parent=1 // pred_check
      _
    $region59: #{tpu_custom_call.1} parent=1 // pred_check_branch
      %55 = sbr.rel (0) target = $region61
    $region60: #{tpu_custom_call.1} parent=1 // pred_region
      _
    $region61: #{tpu_custom_call.1} parent=1 // pred_fallthru
      _
    // Predicated region
    $region62: #{tpu_custom_call.1} parent=1 // pred_check
      _
    $region63: #{tpu_custom_call.1} parent=1 // pred_check_branch
      %57 = sbr.rel (0) target = $region65
    $region64: #{tpu_custom_call.1} parent=1 // pred_region
      _
    $region65: #{tpu_custom_call.1} parent=1 // pred_fallthru
      _
    // Predicated region
    $region66: #{tpu_custom_call.1} parent=1 // pred_check
      _
    $region67: #{tpu_custom_call.1} parent=1 // pred_check_branch
      %59 = sbr.rel (0) target = $region69
    $region68: #{tpu_custom_call.1} parent=1 // pred_region
      _
    $region69: #{tpu_custom_call.1} parent=1 // pred_fallthru
      _
    // Predicated region
    $region70: #{tpu_custom_call.1} parent=1 // pred_check
      _
    $region71: #{tpu_custom_call.1} parent=1 // pred_check_branch
      %61 = sbr.rel (0) target = $region73
    $region72: #{tpu_custom_call.1} parent=1 // pred_region
      _
    $region73: #{tpu_custom_call.1} parent=1 // pred_fallthru
      _
    // Predicated region
    $region74: #{tpu_custom_call.1} parent=1 // pred_check
      _
    $region75: #{tpu_custom_call.1} parent=1 // pred_check_branch
      %63 = sbr.rel (0) target = $region77
    $region76: #{tpu_custom_call.1} parent=1 // pred_region
      _
    $region77: #{tpu_custom_call.1} parent=1 // pred_fallthru
      _
    // Predicated region
    $region78: #{tpu_custom_call.1} parent=1 // pred_check
      _
    $region79: #{tpu_custom_call.1} parent=1 // pred_check_branch
      %65 = sbr.rel (0) target = $region81
    $region80: #{tpu_custom_call.1} parent=1 // pred_region
      _
    $region81: #{tpu_custom_call.1} parent=1 // pred_fallthru
      _
    %v66 = vld [vmem:[%s2] sm:$0xff]
    %v67 = vld [vmem:[%s2 + $0x8] sm:$0xff]
    %v68 = vld [vmem:[%s2 + $0x10] sm:$0xff]
    %v69 = vld [vmem:[%s2 + $0x18] sm:$0xff]
    %v70 = vld [vmem:[%s3] sm:$0xff]
    %v71 = vld [vmem:[%s3 + $0x8] sm:$0xff]
    %v72 = vld [vmem:[%s3 + $0x10] sm:$0xff]
    %v73 = vld [vmem:[%s3 + $0x18] sm:$0xff]
    %v74 = vld [vmem:[%s4] sm:$0xff]
    %v75 = vld [vmem:[%s4 + $0x8] sm:$0xff]
    %v76 = vld [vmem:[%s0] sm:$0xff]
    %v77 = vld [vmem:[%s6] sm:$0xff]
    %v78 = vld [vmem:[%s6 + $0x8] sm:$0xff]
    %v79 = vld [vmem:[%s6 + $0x10] sm:$0xff]
    %v80 = vld [vmem:[%s6 + $0x18] sm:$0xff]
    %v81 = vld [vmem:[%s1] sm:$0xff]
    %v82 = vld [vmem:[%s7] sm:$0xff]
    %v83 = vld [vmem:[%s7 + $0x8] sm:$0xff]
    %v84 = vld [vmem:[%s7 + $0x10] sm:$0xff]
    %v85 = vld [vmem:[%s7 + $0x18] sm:$0xff]
    %vm86 = vcmask 261120
    %v88 = vsel %vm86, %v81, 0
    %90 = vmatpush.msra.mxu0 0.0
    %91 = vmatpush.msra.mxu0 0.0
    %92 = vmatpush.msra.mxu0 0.0
    %93 = vmatpush.msra.mxu0 0.0
    %94 = vmatpush.msra.mxu0 0.0
    %95 = vmatpush.msra.mxu0 0.0
    %96 = vmatpush.msra.mxu0 0.0
    %97 = vmatpush.msra.mxu0 0.0
    %98 = vmatpush.msra.mxu0 0.0
    %99 = vmatpush.msra.mxu0 0.0
    %100 = vmatpush.msra.mxu0 0.0
    %101 = vmatpush.msra.mxu0 0.0
    %102 = vmatpush.msra.mxu0 %v85
    %103 = vmatpush.msra.mxu0 %v84
    %104 = vmatpush.msra.mxu0 %v83
    %105 = vmatpush.msra.mxu0 %v82
    %106 = vmatmul.f32.gmra.mxu0 %v88
    %v107 = vpop.f32.mrf.mxu0
    %v108 = vadd.f32 0.0, %v107
    %109 = vdwg.mxu0
    %v111 = vsel %vm86, %v76, 0
    %113 = vmatpush.msra.mxu0 0.0
    %114 = vmatpush.msra.mxu0 0.0
    %115 = vmatpush.msra.mxu0 0.0
    %116 = vmatpush.msra.mxu0 0.0
    %117 = vmatpush.msra.mxu0 0.0
    %118 = vmatpush.msra.mxu0 0.0
    %119 = vmatpush.msra.mxu0 0.0
    %120 = vmatpush.msra.mxu0 0.0
    %121 = vmatpush.msra.mxu0 0.0
    %122 = vmatpush.msra.mxu0 0.0
    %123 = vmatpush.msra.mxu0 0.0
    %124 = vmatpush.msra.mxu0 0.0
    %125 = vmatpush.msra.mxu0 %v80
    %126 = vmatpush.msra.mxu0 %v79
    %127 = vmatpush.msra.mxu0 %v78
    %128 = vmatpush.msra.mxu0 %v77
    %129 = vmatmul.f32.gmra.mxu0 %v111
    %v130 = vpop.f32.mrf.mxu0
    %v131 = vadd.f32 %v108, %v130
    %132 = vdwg.mxu0
    %v133 = vld [vmem:[%s8] sm:$0x1]
    %v135 = vperm.slane %v133, 0
    %v137 = vadd.f32 %v131, %v135
    %v138 = vld [vmem:[%s9] sm:$0xff]
    %v139 = vld [vmem:[%s9 + $0x8] sm:$0xff]
    %v140 = vld [vmem:[%s9 + $0x10] sm:$0xff]
    %v141 = vld [vmem:[%s9 + $0x18] sm:$0xff]
    %v142 = vld [vmem:[%s9 + $0x20] sm:$0xff]
    %v143 = vld [vmem:[%s9 + $0x28] sm:$0xff]
    %v144 = vld [vmem:[%s9 + $0x30] sm:$0xff]
    %v145 = vld [vmem:[%s9 + $0x38] sm:$0xff]
    %v146 = vld [vmem:[%s9 + $0x40] sm:$0xff]
    %v147 = vld [vmem:[%s9 + $0x48] sm:$0xff]
    %v148 = vld [vmem:[%s9 + $0x50] sm:$0xff]
    %v149 = vld [vmem:[%s9 + $0x58] sm:$0xff]
    %v150 = vld [vmem:[%s9 + $0x60] sm:$0xff]
    %v151 = vld [vmem:[%s9 + $0x68] sm:$0xff]
    %v152 = vld [vmem:[%s9 + $0x70] sm:$0xff]
    %v153 = vld [vmem:[%s9 + $0x78] sm:$0xff]
    %v155 = vsel %vm86, %v137, 0
    %157 = vmatpush.msra.mxu0 0.0
    %158 = vmatpush.msra.mxu0 0.0
    %159 = vmatpush.msra.mxu0 0.0
    %160 = vmatpush.msra.mxu0 0.0
    %161 = vmatpush.msra.mxu0 0.0
    %162 = vmatpush.msra.mxu0 0.0
    %163 = vmatpush.msra.mxu0 0.0
    %164 = vmatpush.msra.mxu0 0.0
    %165 = vmatpush.msra.mxu0 0.0
    %166 = vmatpush.msra.mxu0 0.0
    %167 = vmatpush.msra.mxu0 0.0
    %168 = vmatpush.msra.mxu0 0.0
    %169 = vmatpush.msra.mxu0 %v150
    %170 = vmatpush.msra.mxu0 %v146
    %171 = vmatpush.msra.mxu0 %v142
    %172 = vmatpush.msra.mxu0 %v138
    %173 = vmatmul.f32.gmra.mxu0 %v155
    %v174 = vpop.f32.mrf.mxu0
    %v175 = vadd.f32 0.0, %v174
    %176 = vdwg.mxu0
    %177 = vmatpush.msra.mxu0 0.0
    %178 = vmatpush.msra.mxu0 0.0
    %179 = vmatpush.msra.mxu0 0.0
    %180 = vmatpush.msra.mxu0 0.0
    %181 = vmatpush.msra.mxu0 0.0
    %182 = vmatpush.msra.mxu0 0.0
    %183 = vmatpush.msra.mxu0 0.0
    %184 = vmatpush.msra.mxu0 0.0
    %185 = vmatpush.msra.mxu0 0.0
    %186 = vmatpush.msra.mxu0 0.0
    %187 = vmatpush.msra.mxu0 0.0
    %188 = vmatpush.msra.mxu0 0.0
    %189 = vmatpush.msra.mxu0 %v151
    %190 = vmatpush.msra.mxu0 %v147
    %191 = vmatpush.msra.mxu0 %v143
    %192 = vmatpush.msra.mxu0 %v139
    %193 = vmatmul.f32.gmra.mxu0 %v155
    %v194 = vpop.f32.mrf.mxu0
    %v195 = vadd.f32 0.0, %v194
    %196 = vdwg.mxu0
    %197 = vmatpush.msra.mxu0 0.0
    %198 = vmatpush.msra.mxu0 0.0
    %199 = vmatpush.msra.mxu0 0.0
    %200 = vmatpush.msra.mxu0 0.0
    %201 = vmatpush.msra.mxu0 0.0
    %202 = vmatpush.msra.mxu0 0.0
    %203 = vmatpush.msra.mxu0 0.0
    %204 = vmatpush.msra.mxu0 0.0
    %205 = vmatpush.msra.mxu0 0.0
    %206 = vmatpush.msra.mxu0 0.0
    %207 = vmatpush.msra.mxu0 0.0
    %208 = vmatpush.msra.mxu0 0.0
    %209 = vmatpush.msra.mxu0 %v152
    %210 = vmatpush.msra.mxu0 %v148
    %211 = vmatpush.msra.mxu0 %v144
    %212 = vmatpush.msra.mxu0 %v140
    %213 = vmatmul.f32.gmra.mxu0 %v155
    %v214 = vpop.f32.mrf.mxu0
    %v215 = vadd.f32 0.0, %v214
    %216 = vdwg.mxu0
    %217 = vmatpush.msra.mxu0 0.0
    %218 = vmatpush.msra.mxu0 0.0
    %219 = vmatpush.msra.mxu0 0.0
    %220 = vmatpush.msra.mxu0 0.0
    %221 = vmatpush.msra.mxu0 0.0
    %222 = vmatpush.msra.mxu0 0.0
    %223 = vmatpush.msra.mxu0 0.0
    %224 = vmatpush.msra.mxu0 0.0
    %225 = vmatpush.msra.mxu0 0.0
    %226 = vmatpush.msra.mxu0 0.0
    %227 = vmatpush.msra.mxu0 0.0
    %228 = vmatpush.msra.mxu0 0.0
    %229 = vmatpush.msra.mxu0 %v153
    %230 = vmatpush.msra.mxu0 %v149
    %231 = vmatpush.msra.mxu0 %v145
    %232 = vmatpush.msra.mxu0 %v141
    %233 = vmatmul.f32.gmra.mxu0 %v155
    %v234 = vpop.f32.mrf.mxu0
    %v235 = vadd.f32 0.0, %v234
    %236 = vdwg.mxu0
    %v237 = vld [vmem:[%s10] sm:$0xff]
    %v238 = vld [vmem:[%s10 + $0x8] sm:$0xff]
    %v239 = vld [vmem:[%s10 + $0x10] sm:$0xff]
    %v240 = vld [vmem:[%s10 + $0x18] sm:$0xff]
    %v241 = vld [vmem:[%s10 + $0x20] sm:$0xff]
    %v242 = vld [vmem:[%s10 + $0x28] sm:$0xff]
    %v243 = vld [vmem:[%s10 + $0x30] sm:$0xff]
    %v244 = vld [vmem:[%s10 + $0x38] sm:$0xff]
    %245 = vmatpush.msra.mxu0 0.0
    %246 = vmatpush.msra.mxu0 0.0
    %247 = vmatpush.msra.mxu0 0.0
    %248 = vmatpush.msra.mxu0 0.0
    %249 = vmatpush.msra.mxu0 0.0
    %250 = vmatpush.msra.mxu0 0.0
    %251 = vmatpush.msra.mxu0 0.0
    %252 = vmatpush.msra.mxu0 0.0
    %253 = vmatpush.msra.mxu0 0.0
    %254 = vmatpush.msra.mxu0 0.0
    %255 = vmatpush.msra.mxu0 0.0
    %256 = vmatpush.msra.mxu0 0.0
    %257 = vmatpush.msra.mxu0 %v243
    %258 = vmatpush.msra.mxu0 %v241
    %259 = vmatpush.msra.mxu0 %v239
    %260 = vmatpush.msra.mxu0 %v237
    %261 = vmatmul.f32.gmra.mxu0 %v155
    %v262 = vpop.f32.mrf.mxu0
    %v263 = vadd.f32 0.0, %v262
    %264 = vdwg.mxu0
    %265 = vmatpush.msra.mxu0 0.0
    %266 = vmatpush.msra.mxu0 0.0
    %267 = vmatpush.msra.mxu0 0.0
    %268 = vmatpush.msra.mxu0 0.0
    %269 = vmatpush.msra.mxu0 0.0
    %270 = vmatpush.msra.mxu0 0.0
    %271 = vmatpush.msra.mxu0 0.0
    %272 = vmatpush.msra.mxu0 0.0
    %273 = vmatpush.msra.mxu0 0.0
    %274 = vmatpush.msra.mxu0 0.0
    %275 = vmatpush.msra.mxu0 0.0
    %276 = vmatpush.msra.mxu0 0.0
    %277 = vmatpush.msra.mxu0 %v244
    %278 = vmatpush.msra.mxu0 %v242
    %279 = vmatpush.msra.mxu0 %v240
    %280 = vmatpush.msra.mxu0 %v238
    %281 = vmatmul.f32.gmra.mxu0 %v155
    %v282 = vpop.f32.mrf.mxu0
    %v283 = vadd.f32 0.0, %v282
    %284 = vdwg.mxu0
    %v285 = vsub.f32 %v66, %v175
    %v286 = vsub.f32 %v67, %v195
    %v287 = vsub.f32 %v68, %v215
    %v288 = vsub.f32 %v69, %v235
    %v289 = vsub.f32 %v74, %v263
    %v290 = vsub.f32 %v75, %v283
    %v291 = vmul.f32 %v285, %v285
    %v292 = vmul.f32 %v286, %v286
    %v293 = vmul.f32 %v287, %v287
    %v294 = vmul.f32 %v288, %v288
    %v295 = vld [vmem:[%s11] sm:$0xff]
    %v296 = vld [vmem:[%s11 + $0x8] sm:$0xff]
    %v297 = vld [vmem:[%s11 + $0x10] sm:$0xff]
    %v298 = vld [vmem:[%s11 + $0x18] sm:$0xff]
    %v299 = vld [vmem:[%s11 + $0x20] sm:$0xff]
    %v300 = vld [vmem:[%s11 + $0x28] sm:$0xff]
    %v301 = vld [vmem:[%s11 + $0x30] sm:$0xff]
    %v302 = vld [vmem:[%s11 + $0x38] sm:$0xff]
    %v303 = vld [vmem:[%s11 + $0x40] sm:$0xff]
    %v304 = vld [vmem:[%s11 + $0x48] sm:$0xff]
    %v305 = vld [vmem:[%s11 + $0x50] sm:$0xff]
    %v306 = vld [vmem:[%s11 + $0x58] sm:$0xff]
    %v307 = vld [vmem:[%s11 + $0x60] sm:$0xff]
    %v308 = vld [vmem:[%s11 + $0x68] sm:$0xff]
    %v309 = vld [vmem:[%s11 + $0x70] sm:$0xff]
    %v310 = vld [vmem:[%s11 + $0x78] sm:$0xff]
    %v311 = vld [vmem:[%s11 + $0x80] sm:$0xff]
    %v312 = vld [vmem:[%s11 + $0x88] sm:$0xff]
    %v313 = vld [vmem:[%s11 + $0x90] sm:$0xff]
    %v314 = vld [vmem:[%s11 + $0x98] sm:$0xff]
    %v315 = vld [vmem:[%s11 + $0xa0] sm:$0xff]
    %v316 = vld [vmem:[%s11 + $0xa8] sm:$0xff]
    %v317 = vld [vmem:[%s11 + $0xb0] sm:$0xff]
    %v318 = vld [vmem:[%s11 + $0xb8] sm:$0xff]
    %v319 = vld [vmem:[%s11 + $0xc0] sm:$0xff]
    %v320 = vld [vmem:[%s11 + $0xc8] sm:$0xff]
    %v321 = vld [vmem:[%s11 + $0xd0] sm:$0xff]
    %v322 = vld [vmem:[%s11 + $0xd8] sm:$0xff]
    %v323 = vld [vmem:[%s11 + $0xe0] sm:$0xff]
    %v324 = vld [vmem:[%s11 + $0xe8] sm:$0xff]
    %v325 = vld [vmem:[%s11 + $0xf0] sm:$0xff]
    %v326 = vld [vmem:[%s11 + $0xf8] sm:$0xff]
    %v327 = vld [vmem:[%s11 + $0x100] sm:$0xff]
    %v328 = vld [vmem:[%s11 + $0x108] sm:$0xff]
    %v329 = vld [vmem:[%s11 + $0x110] sm:$0xff]
    %v330 = vld [vmem:[%s11 + $0x118] sm:$0xff]
    %v331 = vld [vmem:[%s11 + $0x120] sm:$0xff]
    %v332 = vld [vmem:[%s11 + $0x128] sm:$0xff]
    %v333 = vld [vmem:[%s11 + $0x130] sm:$0xff]
    %v334 = vld [vmem:[%s11 + $0x138] sm:$0xff]
    %v335 = vld [vmem:[%s11 + $0x140] sm:$0xff]
    %v336 = vld [vmem:[%s11 + $0x148] sm:$0xff]
    %v337 = vld [vmem:[%s11 + $0x150] sm:$0xff]
    %v338 = vld [vmem:[%s11 + $0x158] sm:$0xff]
    %v339 = vld [vmem:[%s11 + $0x160] sm:$0xff]
    %v340 = vld [vmem:[%s11 + $0x168] sm:$0xff]
    %v341 = vld [vmem:[%s11 + $0x170] sm:$0xff]
    %v342 = vld [vmem:[%s11 + $0x178] sm:$0xff]
    %v343 = vld [vmem:[%s11 + $0x180] sm:$0xff]
    %v344 = vld [vmem:[%s11 + $0x188] sm:$0xff]
    %v345 = vld [vmem:[%s11 + $0x190] sm:$0xff]
    %v346 = vld [vmem:[%s11 + $0x198] sm:$0xff]
    %v347 = vld [vmem:[%s11 + $0x1a0] sm:$0xff]
    %v348 = vld [vmem:[%s11 + $0x1a8] sm:$0xff]
    %v349 = vld [vmem:[%s11 + $0x1b0] sm:$0xff]
    %v350 = vld [vmem:[%s11 + $0x1b8] sm:$0xff]
    %v351 = vld [vmem:[%s11 + $0x1c0] sm:$0xff]
    %v352 = vld [vmem:[%s11 + $0x1c8] sm:$0xff]
    %v353 = vld [vmem:[%s11 + $0x1d0] sm:$0xff]
    %v354 = vld [vmem:[%s11 + $0x1d8] sm:$0xff]
    %v355 = vld [vmem:[%s11 + $0x1e0] sm:$0xff]
    %v356 = vld [vmem:[%s11 + $0x1e8] sm:$0xff]
    %v357 = vld [vmem:[%s11 + $0x1f0] sm:$0xff]
    %v358 = vld [vmem:[%s11 + $0x1f8] sm:$0xff]
    %v359 = vmul.f32 %v289, %v289
    %v360 = vmul.f32 %v290, %v290
    %v361 = vld [vmem:[%s12] sm:$0xff]
    %v362 = vld [vmem:[%s12 + $0x8] sm:$0xff]
    %v363 = vld [vmem:[%s12 + $0x10] sm:$0xff]
    %v364 = vld [vmem:[%s12 + $0x18] sm:$0xff]
    %v365 = vld [vmem:[%s12 + $0x20] sm:$0xff]
    %v366 = vld [vmem:[%s12 + $0x28] sm:$0xff]
    %v367 = vld [vmem:[%s12 + $0x30] sm:$0xff]
    %v368 = vld [vmem:[%s12 + $0x38] sm:$0xff]
    %v369 = vld [vmem:[%s12 + $0x40] sm:$0xff]
    %v370 = vld [vmem:[%s12 + $0x48] sm:$0xff]
    %v371 = vld [vmem:[%s12 + $0x50] sm:$0xff]
    %v372 = vld [vmem:[%s12 + $0x58] sm:$0xff]
    %v373 = vld [vmem:[%s12 + $0x60] sm:$0xff]
    %v374 = vld [vmem:[%s12 + $0x68] sm:$0xff]
    %v375 = vld [vmem:[%s12 + $0x70] sm:$0xff]
    %v376 = vld [vmem:[%s12 + $0x78] sm:$0xff]
    %v377 = vld [vmem:[%s12 + $0x80] sm:$0xff]
    %v378 = vld [vmem:[%s12 + $0x88] sm:$0xff]
    %v379 = vld [vmem:[%s12 + $0x90] sm:$0xff]
    %v380 = vld [vmem:[%s12 + $0x98] sm:$0xff]
    %v381 = vld [vmem:[%s12 + $0xa0] sm:$0xff]
    %v382 = vld [vmem:[%s12 + $0xa8] sm:$0xff]
    %v383 = vld [vmem:[%s12 + $0xb0] sm:$0xff]
    %v384 = vld [vmem:[%s12 + $0xb8] sm:$0xff]
    %v385 = vld [vmem:[%s12 + $0xc0] sm:$0xff]
    %v386 = vld [vmem:[%s12 + $0xc8] sm:$0xff]
    %v387 = vld [vmem:[%s12 + $0xd0] sm:$0xff]
    %v388 = vld [vmem:[%s12 + $0xd8] sm:$0xff]
    %v389 = vld [vmem:[%s12 + $0xe0] sm:$0xff]
    %v390 = vld [vmem:[%s12 + $0xe8] sm:$0xff]
    %v391 = vld [vmem:[%s12 + $0xf0] sm:$0xff]
    %v392 = vld [vmem:[%s12 + $0xf8] sm:$0xff]
    %393 = vmatpush.msra.mxu0 %v376
    %394 = vmatpush.msra.mxu0 %v375
    %395 = vmatpush.msra.mxu0 %v374
    %396 = vmatpush.msra.mxu0 %v373
    %397 = vmatpush.msra.mxu0 %v372
    %398 = vmatpush.msra.mxu0 %v371
    %399 = vmatpush.msra.mxu0 %v370
    %400 = vmatpush.msra.mxu0 %v369
    %401 = vmatpush.msra.mxu0 %v368
    %402 = vmatpush.msra.mxu0 %v367
    %403 = vmatpush.msra.mxu0 %v366
    %404 = vmatpush.msra.mxu0 %v365
    %405 = vmatpush.msra.mxu0 %v364
    %406 = vmatpush.msra.mxu0 %v363
    %407 = vmatpush.msra.mxu0 %v362
    %408 = vmatpush.msra.mxu0 %v361
    %409 = vmatmul.f32.gmra.mxu0 %v359
    %v410 = vpop.f32.mrf.mxu0
    %v411 = vadd.f32 0.0, %v410
    %412 = vdwg.mxu0
    %413 = vmatpush.msra.mxu0 %v392
    %414 = vmatpush.msra.mxu0 %v391
    %415 = vmatpush.msra.mxu0 %v390
    %416 = vmatpush.msra.mxu0 %v389
    %417 = vmatpush.msra.mxu0 %v388
    %418 = vmatpush.msra.mxu0 %v387
    %419 = vmatpush.msra.mxu0 %v386
    %420 = vmatpush.msra.mxu0 %v385
    %421 = vmatpush.msra.mxu0 %v384
    %422 = vmatpush.msra.mxu0 %v383
    %423 = vmatpush.msra.mxu0 %v382
    %424 = vmatpush.msra.mxu0 %v381
    %425 = vmatpush.msra.mxu0 %v380
    %426 = vmatpush.msra.mxu0 %v379
    %427 = vmatpush.msra.mxu0 %v378
    %428 = vmatpush.msra.mxu0 %v377
    %429 = vmatmul.f32.gmra.mxu0 %v360
    %v430 = vpop.f32.mrf.mxu0
    %v431 = vadd.f32 %v411, %v430
    %432 = vdwg.mxu0
    %433 = vmatpush.msra.mxu0 %v310
    %434 = vmatpush.msra.mxu0 %v309
    %435 = vmatpush.msra.mxu0 %v308
    %436 = vmatpush.msra.mxu0 %v307
    %437 = vmatpush.msra.mxu0 %v306
    %438 = vmatpush.msra.mxu0 %v305
    %439 = vmatpush.msra.mxu0 %v304
    %440 = vmatpush.msra.mxu0 %v303
    %441 = vmatpush.msra.mxu0 %v302
    %442 = vmatpush.msra.mxu0 %v301
    %443 = vmatpush.msra.mxu0 %v300
    %444 = vmatpush.msra.mxu0 %v299
    %445 = vmatpush.msra.mxu0 %v298
    %446 = vmatpush.msra.mxu0 %v297
    %447 = vmatpush.msra.mxu0 %v296
    %448 = vmatpush.msra.mxu0 %v295
    %449 = vmatmul.f32.gmra.mxu0 %v291
    %v450 = vpop.f32.mrf.mxu0
    %v451 = vadd.f32 %v431, %v450
    %452 = vdwg.mxu0
    %453 = vmatpush.msra.mxu0 %v326
    %454 = vmatpush.msra.mxu0 %v325
    %455 = vmatpush.msra.mxu0 %v324
    %456 = vmatpush.msra.mxu0 %v323
    %457 = vmatpush.msra.mxu0 %v322
    %458 = vmatpush.msra.mxu0 %v321
    %459 = vmatpush.msra.mxu0 %v320
    %460 = vmatpush.msra.mxu0 %v319
    %461 = vmatpush.msra.mxu0 %v318
    %462 = vmatpush.msra.mxu0 %v317
    %463 = vmatpush.msra.mxu0 %v316
    %464 = vmatpush.msra.mxu0 %v315
    %465 = vmatpush.msra.mxu0 %v314
    %466 = vmatpush.msra.mxu0 %v313
    %467 = vmatpush.msra.mxu0 %v312
    %468 = vmatpush.msra.mxu0 %v311
    %469 = vmatmul.f32.gmra.mxu0 %v292
    %v470 = vpop.f32.mrf.mxu0
    %v471 = vadd.f32 %v451, %v470
    %472 = vdwg.mxu0
    %473 = vmatpush.msra.mxu0 %v342
    %474 = vmatpush.msra.mxu0 %v341
    %475 = vmatpush.msra.mxu0 %v340
    %476 = vmatpush.msra.mxu0 %v339
    %477 = vmatpush.msra.mxu0 %v338
    %478 = vmatpush.msra.mxu0 %v337
    %479 = vmatpush.msra.mxu0 %v336
    %480 = vmatpush.msra.mxu0 %v335
    %481 = vmatpush.msra.mxu0 %v334
    %482 = vmatpush.msra.mxu0 %v333
    %483 = vmatpush.msra.mxu0 %v332
    %484 = vmatpush.msra.mxu0 %v331
    %485 = vmatpush.msra.mxu0 %v330
    %486 = vmatpush.msra.mxu0 %v329
    %487 = vmatpush.msra.mxu0 %v328
    %488 = vmatpush.msra.mxu0 %v327
    %489 = vmatmul.f32.gmra.mxu0 %v293
    %v490 = vpop.f32.mrf.mxu0
    %v491 = vadd.f32 %v471, %v490
    %492 = vdwg.mxu0
    %493 = vmatpush.msra.mxu0 %v358
    %494 = vmatpush.msra.mxu0 %v357
    %495 = vmatpush.msra.mxu0 %v356
    %496 = vmatpush.msra.mxu0 %v355
    %497 = vmatpush.msra.mxu0 %v354
    %498 = vmatpush.msra.mxu0 %v353
    %499 = vmatpush.msra.mxu0 %v352
    %500 = vmatpush.msra.mxu0 %v351
    %501 = vmatpush.msra.mxu0 %v350
    %502 = vmatpush.msra.mxu0 %v349
    %503 = vmatpush.msra.mxu0 %v348
    %504 = vmatpush.msra.mxu0 %v347
    %505 = vmatpush.msra.mxu0 %v346
    %506 = vmatpush.msra.mxu0 %v345
    %507 = vmatpush.msra.mxu0 %v344
    %508 = vmatpush.msra.mxu0 %v343
    %509 = vmatmul.f32.gmra.mxu0 %v294
    %v510 = vpop.f32.mrf.mxu0
    %v511 = vadd.f32 %v491, %v510
    %512 = vdwg.mxu0
    %v513 = vrsqrt.pop %v511
    %v514 = vmul.f32 %v513, %v511
    %v515 = vmul.f32 %v514, %v513
    %v516 = vmul.f32 0.5, %v515
    %v517 = vsub.f32 1.5, %v516
    %v518 = vmul.f32 %v513, %v517
    %v519 = vmul.f32 %v511, %v518
    %vm520 = vcmp.eq.f32.partialorder %v511, inf
    %v521 = vsel %vm520, %v511, %v519
    %vm522 = vcmp.eq.f32.partialorder %v511, 0.0
    %v523 = vand.u32 %v511, 2147483648
    %v524 = vsel %vm522, %v523, %v521
    %v525 = vsub.f32 0.0, %v524
    %v526 = vld [vmem:[%s5] sm:$0xff]
    %v527 = vadd.f32 %v525, %v526
    %v529 = vrot.slane %v527, 1
    %v530 = vrot.slane %v527, 2
    %v531 = vrot.slane %v527, 3
    %v532 = vrot.slane %v527, 4
    %v533 = vrot.slane %v527, 5
    %v534 = vrot.slane %v527, 6
    %v535 = vrot.slane %v527, 7
    %v536 = vperm.slane %v527, 0
    %v537 = vlaneseq
    %v538 = vshrl.u32 %v537, 7
    %540 = vset.pattern.permute.xlu0 %v538
    %541 = vperm.xlu0 %540, %v536
    %v542 = vpop.permute.xlu0 %541
    %v543 = vlaneseq
    %v544 = vshrl.u32 %v543, 7
    %v545 = vadd.s32 %v544, 8
    %546 = vset.pattern.permute.xlu0 %v545
    %547 = vperm.xlu0 %546, %v536
    %v548 = vpop.permute.xlu0 %547
    %v549 = vlaneseq
    %v550 = vshrl.u32 %v549, 7
    %v551 = vadd.s32 %v550, 16
    %552 = vset.pattern.permute.xlu0 %v551
    %553 = vperm.xlu0 %552, %v536
    %v554 = vpop.permute.xlu0 %553
    %v555 = vperm.slane %v527, 1
    %v556 = vlaneseq
    %v557 = vshrl.u32 %v556, 7
    %559 = vset.pattern.permute.xlu0 %v557
    %560 = vperm.xlu0 %559, %v555
    %v561 = vpop.permute.xlu0 %560
    %v562 = vlaneseq
    %v563 = vshrl.u32 %v562, 7
    %v564 = vadd.s32 %v563, 8
    %565 = vset.pattern.permute.xlu0 %v564
    %566 = vperm.xlu0 %565, %v555
    %v567 = vpop.permute.xlu0 %566
    %v568 = vlaneseq
    %v569 = vshrl.u32 %v568, 7
    %v570 = vadd.s32 %v569, 16
    %571 = vset.pattern.permute.xlu0 %v570
    %572 = vperm.xlu0 %571, %v555
    %v573 = vpop.permute.xlu0 %572
    %v574 = vperm.slane %v527, 2
    %v575 = vlaneseq
    %v576 = vshrl.u32 %v575, 7
    %578 = vset.pattern.permute.xlu0 %v576
    %579 = vperm.xlu0 %578, %v574
    %v580 = vpop.permute.xlu0 %579
    %v581 = vlaneseq
    %v582 = vshrl.u32 %v581, 7
    %v583 = vadd.s32 %v582, 8
    %584 = vset.pattern.permute.xlu0 %v583
    %585 = vperm.xlu0 %584, %v574
    %v586 = vpop.permute.xlu0 %585
    %v587 = vlaneseq
    %v588 = vshrl.u32 %v587, 7
    %v589 = vadd.s32 %v588, 16
    %590 = vset.pattern.permute.xlu0 %v589
    %591 = vperm.xlu0 %590, %v574
    %v592 = vpop.permute.xlu0 %591
    %v593 = vperm.slane %v527, 3
    %v594 = vlaneseq
    %v595 = vshrl.u32 %v594, 7
    %597 = vset.pattern.permute.xlu0 %v595
    %598 = vperm.xlu0 %597, %v593
    %v599 = vpop.permute.xlu0 %598
    %v600 = vlaneseq
    %v601 = vshrl.u32 %v600, 7
    %v602 = vadd.s32 %v601, 8
    %603 = vset.pattern.permute.xlu0 %v602
    %604 = vperm.xlu0 %603, %v593
    %v605 = vpop.permute.xlu0 %604
    %v606 = vlaneseq
    %v607 = vshrl.u32 %v606, 7
    %v608 = vadd.s32 %v607, 16
    %609 = vset.pattern.permute.xlu0 %v608
    %610 = vperm.xlu0 %609, %v593
    %v611 = vpop.permute.xlu0 %610
    %v612 = vperm.slane %v527, 4
    %v613 = vlaneseq
    %v614 = vshrl.u32 %v613, 7
    %616 = vset.pattern.permute.xlu0 %v614
    %617 = vperm.xlu0 %616, %v612
    %v618 = vpop.permute.xlu0 %617
    %v619 = vlaneseq
    %v620 = vshrl.u32 %v619, 7
    %v621 = vadd.s32 %v620, 8
    %622 = vset.pattern.permute.xlu0 %v621
    %623 = vperm.xlu0 %622, %v612
    %v624 = vpop.permute.xlu0 %623
    %v625 = vlaneseq
    %v626 = vshrl.u32 %v625, 7
    %v627 = vadd.s32 %v626, 16
    %628 = vset.pattern.permute.xlu0 %v627
    %629 = vperm.xlu0 %628, %v612
    %v630 = vpop.permute.xlu0 %629
    %v631 = vperm.slane %v527, 5
    %v632 = vlaneseq
    %v633 = vshrl.u32 %v632, 7
    %635 = vset.pattern.permute.xlu0 %v633
    %636 = vperm.xlu0 %635, %v631
    %v637 = vpop.permute.xlu0 %636
    %v638 = vlaneseq
    %v639 = vshrl.u32 %v638, 7
    %v640 = vadd.s32 %v639, 8
    %641 = vset.pattern.permute.xlu0 %v640
    %642 = vperm.xlu0 %641, %v631
    %v643 = vpop.permute.xlu0 %642
    %v644 = vlaneseq
    %v645 = vshrl.u32 %v644, 7
    %v646 = vadd.s32 %v645, 16
    %647 = vset.pattern.permute.xlu0 %v646
    %648 = vperm.xlu0 %647, %v631
    %v649 = vpop.permute.xlu0 %648
    %v650 = vperm.slane %v527, 6
    %v651 = vlaneseq
    %v652 = vshrl.u32 %v651, 7
    %654 = vset.pattern.permute.xlu0 %v652
    %655 = vperm.xlu0 %654, %v650
    %v656 = vpop.permute.xlu0 %655
    %v657 = vlaneseq
    %v658 = vshrl.u32 %v657, 7
    %v659 = vadd.s32 %v658, 8
    %660 = vset.pattern.permute.xlu0 %v659
    %661 = vperm.xlu0 %660, %v650
    %v662 = vpop.permute.xlu0 %661
    %v663 = vlaneseq
    %v664 = vshrl.u32 %v663, 7
    %v665 = vadd.s32 %v664, 16
    %666 = vset.pattern.permute.xlu0 %v665
    %667 = vperm.xlu0 %666, %v650
    %v668 = vpop.permute.xlu0 %667
    %v669 = vperm.slane %v527, 7
    %v670 = vlaneseq
    %v671 = vshrl.u32 %v670, 7
    %673 = vset.pattern.permute.xlu0 %v671
    %674 = vperm.xlu0 %673, %v669
    %v675 = vpop.permute.xlu0 %674
    %v676 = vlaneseq
    %v677 = vshrl.u32 %v676, 7
    %v678 = vadd.s32 %v677, 8
    %679 = vset.pattern.permute.xlu0 %v678
    %680 = vperm.xlu0 %679, %v669
    %v681 = vpop.permute.xlu0 %680
    %v682 = vlaneseq
    %v683 = vshrl.u32 %v682, 7
    %v684 = vadd.s32 %v683, 16
    %685 = vset.pattern.permute.xlu0 %v684
    %686 = vperm.xlu0 %685, %v669
    %v687 = vpop.permute.xlu0 %686
    %v688 = vperm.slane %v527, 0
    %v689 = vperm.slane %v529, 0
    %v690 = vperm.slane %v530, 0
    %v691 = vperm.slane %v531, 0
    %v692 = vperm.slane %v532, 0
    %v693 = vperm.slane %v533, 0
    %v694 = vperm.slane %v534, 0
    %v695 = vperm.slane %v535, 0
    %vm704 = vcmp.gt.f32.partialorder %v688, %v542
    %vm705 = vcmp.gt.f32.partialorder %v688, %v548
    %vm706 = vcmp.gt.f32.partialorder %v688, %v554
    %vm707 = vcmp.gt.f32.partialorder %v689, %v561
    %vm708 = vcmp.gt.f32.partialorder %v689, %v567
    %vm709 = vcmp.gt.f32.partialorder %v689, %v573
    %vm710 = vcmp.gt.f32.partialorder %v690, %v580
    %vm711 = vcmp.gt.f32.partialorder %v690, %v586
    %vm712 = vcmp.gt.f32.partialorder %v690, %v592
    %vm713 = vcmp.gt.f32.partialorder %v691, %v599
    %vm714 = vcmp.gt.f32.partialorder %v691, %v605
    %vm715 = vcmp.gt.f32.partialorder %v691, %v611
    %vm716 = vcmp.gt.f32.partialorder %v692, %v618
    %vm717 = vcmp.gt.f32.partialorder %v692, %v624
    %vm718 = vcmp.gt.f32.partialorder %v692, %v630
    %vm719 = vcmp.gt.f32.partialorder %v693, %v637
    %vm720 = vcmp.gt.f32.partialorder %v693, %v643
    %vm721 = vcmp.gt.f32.partialorder %v693, %v649
    %vm722 = vcmp.gt.f32.partialorder %v694, %v656
    %vm723 = vcmp.gt.f32.partialorder %v694, %v662
    %vm724 = vcmp.gt.f32.partialorder %v694, %v668
    %vm725 = vcmp.gt.f32.partialorder %v695, %v675
    %vm726 = vcmp.gt.f32.partialorder %v695, %v681
    %vm727 = vcmp.gt.f32.partialorder %v695, %v687
    %v728 = vsel %vm704, 1, 0
    %v729 = vsel %vm705, 1, 0
    %v730 = vsel %vm706, 1, 0
    %v731 = vsel %vm707, 1, 0
    %v732 = vsel %vm708, 1, 0
    %v733 = vsel %vm709, 1, 0
    %v734 = vsel %vm710, 1, 0
    %v735 = vsel %vm711, 1, 0
    %v736 = vsel %vm712, 1, 0
    %v737 = vsel %vm713, 1, 0
    %v738 = vsel %vm714, 1, 0
    %v739 = vsel %vm715, 1, 0
    %v740 = vsel %vm716, 1, 0
    %v741 = vsel %vm717, 1, 0
    %v742 = vsel %vm718, 1, 0
    %v743 = vsel %vm719, 1, 0
    %v744 = vsel %vm720, 1, 0
    %v745 = vsel %vm721, 1, 0
    %v746 = vsel %vm722, 1, 0
    %v747 = vsel %vm723, 1, 0
    %v748 = vsel %vm724, 1, 0
    %v749 = vsel %vm725, 1, 0
    %v750 = vsel %vm726, 1, 0
    %v751 = vsel %vm727, 1, 0
    %vm752 = vcmask 195584
    %v753 = vsel %vm752, %v728, 0
    %v754 = vand.u32 %v753, 65535
    %v755 = vshrl.u32 %v753, 16
    %v756 = vcvt.s32.f32 %v754
    %v757 = vcvt.s32.f32 %v755
    %758 = vadd.xlane.f32.xlu0 %v756
    %v759 = vpop.xlane.xlu0 %758
    %760 = vadd.xlane.f32.xlu0 %v757
    %v761 = vpop.xlane.xlu0 %760
    %v762 = vcvt.f32.s32 %v759
    %v763 = vcvt.f32.s32 %v761
    %v764 = vshll.u32 %v763, 16
    %v765 = vadd.s32 %v764, %v762
    %v766 = vsel %vm752, %v729, 0
    %v767 = vand.u32 %v766, 65535
    %v768 = vshrl.u32 %v766, 16
    %v769 = vcvt.s32.f32 %v767
    %v770 = vcvt.s32.f32 %v768
    %771 = vadd.xlane.f32.xlu0 %v769
    %v772 = vpop.xlane.xlu0 %771
    %773 = vadd.xlane.f32.xlu0 %v770
    %v774 = vpop.xlane.xlu0 %773
    %v775 = vcvt.f32.s32 %v772
    %v776 = vcvt.f32.s32 %v774
    %v777 = vshll.u32 %v776, 16
    %v778 = vadd.s32 %v777, %v775
    %v779 = vsel %vm752, %v730, 0
    %v780 = vand.u32 %v779, 65535
    %v781 = vshrl.u32 %v779, 16
    %v782 = vcvt.s32.f32 %v780
    %v783 = vcvt.s32.f32 %v781
    %784 = vadd.xlane.f32.xlu0 %v782
    %v785 = vpop.xlane.xlu0 %784
    %786 = vadd.xlane.f32.xlu0 %v783
    %v787 = vpop.xlane.xlu0 %786
    %v788 = vcvt.f32.s32 %v785
    %v789 = vcvt.f32.s32 %v787
    %v790 = vshll.u32 %v789, 16
    %v791 = vadd.s32 %v790, %v788
    %v792 = vsel %vm752, %v731, 0
    %v793 = vand.u32 %v792, 65535
    %v794 = vshrl.u32 %v792, 16
    %v795 = vcvt.s32.f32 %v793
    %v796 = vcvt.s32.f32 %v794
    %797 = vadd.xlane.f32.xlu0 %v795
    %v798 = vpop.xlane.xlu0 %797
    %799 = vadd.xlane.f32.xlu0 %v796
    %v800 = vpop.xlane.xlu0 %799
    %v801 = vcvt.f32.s32 %v798
    %v802 = vcvt.f32.s32 %v800
    %v803 = vshll.u32 %v802, 16
    %v804 = vadd.s32 %v803, %v801
    %v805 = vsel %vm752, %v732, 0
    %v806 = vand.u32 %v805, 65535
    %v807 = vshrl.u32 %v805, 16
    %v808 = vcvt.s32.f32 %v806
    %v809 = vcvt.s32.f32 %v807
    %810 = vadd.xlane.f32.xlu0 %v808
    %v811 = vpop.xlane.xlu0 %810
    %812 = vadd.xlane.f32.xlu0 %v809
    %v813 = vpop.xlane.xlu0 %812
    %v814 = vcvt.f32.s32 %v811
    %v815 = vcvt.f32.s32 %v813
    %v816 = vshll.u32 %v815, 16
    %v817 = vadd.s32 %v816, %v814
    %v818 = vsel %vm752, %v733, 0
    %v819 = vand.u32 %v818, 65535
    %v820 = vshrl.u32 %v818, 16
    %v821 = vcvt.s32.f32 %v819
    %v822 = vcvt.s32.f32 %v820
    %823 = vadd.xlane.f32.xlu0 %v821
    %v824 = vpop.xlane.xlu0 %823
    %825 = vadd.xlane.f32.xlu0 %v822
    %v826 = vpop.xlane.xlu0 %825
    %v827 = vcvt.f32.s32 %v824
    %v828 = vcvt.f32.s32 %v826
    %v829 = vshll.u32 %v828, 16
    %v830 = vadd.s32 %v829, %v827
    %v831 = vsel %vm752, %v734, 0
    %v832 = vand.u32 %v831, 65535
    %v833 = vshrl.u32 %v831, 16
    %v834 = vcvt.s32.f32 %v832
    %v835 = vcvt.s32.f32 %v833
    %836 = vadd.xlane.f32.xlu0 %v834
    %v837 = vpop.xlane.xlu0 %836
    %838 = vadd.xlane.f32.xlu0 %v835
    %v839 = vpop.xlane.xlu0 %838
    %v840 = vcvt.f32.s32 %v837
    %v841 = vcvt.f32.s32 %v839
    %v842 = vshll.u32 %v841, 16
    %v843 = vadd.s32 %v842, %v840
    %v844 = vsel %vm752, %v735, 0
    %v845 = vand.u32 %v844, 65535
    %v846 = vshrl.u32 %v844, 16
    %v847 = vcvt.s32.f32 %v845
    %v848 = vcvt.s32.f32 %v846
    %849 = vadd.xlane.f32.xlu0 %v847
    %v850 = vpop.xlane.xlu0 %849
    %851 = vadd.xlane.f32.xlu0 %v848
    %v852 = vpop.xlane.xlu0 %851
    %v853 = vcvt.f32.s32 %v850
    %v854 = vcvt.f32.s32 %v852
    %v855 = vshll.u32 %v854, 16
    %v856 = vadd.s32 %v855, %v853
    %v857 = vsel %vm752, %v736, 0
    %v858 = vand.u32 %v857, 65535
    %v859 = vshrl.u32 %v857, 16
    %v860 = vcvt.s32.f32 %v858
    %v861 = vcvt.s32.f32 %v859
    %862 = vadd.xlane.f32.xlu0 %v860
    %v863 = vpop.xlane.xlu0 %862
    %864 = vadd.xlane.f32.xlu0 %v861
    %v865 = vpop.xlane.xlu0 %864
    %v866 = vcvt.f32.s32 %v863
    %v867 = vcvt.f32.s32 %v865
    %v868 = vshll.u32 %v867, 16
    %v869 = vadd.s32 %v868, %v866
    %v870 = vsel %vm752, %v737, 0
    %v871 = vand.u32 %v870, 65535
    %v872 = vshrl.u32 %v870, 16
    %v873 = vcvt.s32.f32 %v871
    %v874 = vcvt.s32.f32 %v872
    %875 = vadd.xlane.f32.xlu0 %v873
    %v876 = vpop.xlane.xlu0 %875
    %877 = vadd.xlane.f32.xlu0 %v874
    %v878 = vpop.xlane.xlu0 %877
    %v879 = vcvt.f32.s32 %v876
    %v880 = vcvt.f32.s32 %v878
    %v881 = vshll.u32 %v880, 16
    %v882 = vadd.s32 %v881, %v879
    %v883 = vsel %vm752, %v738, 0
    %v884 = vand.u32 %v883, 65535
    %v885 = vshrl.u32 %v883, 16
    %v886 = vcvt.s32.f32 %v884
    %v887 = vcvt.s32.f32 %v885
    %888 = vadd.xlane.f32.xlu0 %v886
    %v889 = vpop.xlane.xlu0 %888
    %890 = vadd.xlane.f32.xlu0 %v887
    %v891 = vpop.xlane.xlu0 %890
    %v892 = vcvt.f32.s32 %v889
    %v893 = vcvt.f32.s32 %v891
    %v894 = vshll.u32 %v893, 16
    %v895 = vadd.s32 %v894, %v892
    %v896 = vsel %vm752, %v739, 0
    %v897 = vand.u32 %v896, 65535
    %v898 = vshrl.u32 %v896, 16
    %v899 = vcvt.s32.f32 %v897
    %v900 = vcvt.s32.f32 %v898
    %901 = vadd.xlane.f32.xlu0 %v899
    %v902 = vpop.xlane.xlu0 %901
    %903 = vadd.xlane.f32.xlu0 %v900
    %v904 = vpop.xlane.xlu0 %903
    %v905 = vcvt.f32.s32 %v902
    %v906 = vcvt.f32.s32 %v904
    %v907 = vshll.u32 %v906, 16
    %v908 = vadd.s32 %v907, %v905
    %v909 = vsel %vm752, %v740, 0
    %v910 = vand.u32 %v909, 65535
    %v911 = vshrl.u32 %v909, 16
    %v912 = vcvt.s32.f32 %v910
    %v913 = vcvt.s32.f32 %v911
    %914 = vadd.xlane.f32.xlu0 %v912
    %v915 = vpop.xlane.xlu0 %914
    %916 = vadd.xlane.f32.xlu0 %v913
    %v917 = vpop.xlane.xlu0 %916
    %v918 = vcvt.f32.s32 %v915
    %v919 = vcvt.f32.s32 %v917
    %v920 = vshll.u32 %v919, 16
    %v921 = vadd.s32 %v920, %v918
    %v922 = vsel %vm752, %v741, 0
    %v923 = vand.u32 %v922, 65535
    %v924 = vshrl.u32 %v922, 16
    %v925 = vcvt.s32.f32 %v923
    %v926 = vcvt.s32.f32 %v924
    %927 = vadd.xlane.f32.xlu0 %v925
    %v928 = vpop.xlane.xlu0 %927
    %929 = vadd.xlane.f32.xlu0 %v926
    %v930 = vpop.xlane.xlu0 %929
    %v931 = vcvt.f32.s32 %v928
    %v932 = vcvt.f32.s32 %v930
    %v933 = vshll.u32 %v932, 16
    %v934 = vadd.s32 %v933, %v931
    %v935 = vsel %vm752, %v742, 0
    %v936 = vand.u32 %v935, 65535
    %v937 = vshrl.u32 %v935, 16
    %v938 = vcvt.s32.f32 %v936
    %v939 = vcvt.s32.f32 %v937
    %940 = vadd.xlane.f32.xlu0 %v938
    %v941 = vpop.xlane.xlu0 %940
    %942 = vadd.xlane.f32.xlu0 %v939
    %v943 = vpop.xlane.xlu0 %942
    %v944 = vcvt.f32.s32 %v941
    %v945 = vcvt.f32.s32 %v943
    %v946 = vshll.u32 %v945, 16
    %v947 = vadd.s32 %v946, %v944
    %v948 = vsel %vm752, %v743, 0
    %v949 = vand.u32 %v948, 65535
    %v950 = vshrl.u32 %v948, 16
    %v951 = vcvt.s32.f32 %v949
    %v952 = vcvt.s32.f32 %v950
    %953 = vadd.xlane.f32.xlu0 %v951
    %v954 = vpop.xlane.xlu0 %953
    %955 = vadd.xlane.f32.xlu0 %v952
    %v956 = vpop.xlane.xlu0 %955
    %v957 = vcvt.f32.s32 %v954
    %v958 = vcvt.f32.s32 %v956
    %v959 = vshll.u32 %v958, 16
    %v960 = vadd.s32 %v959, %v957
    %v961 = vsel %vm752, %v744, 0
    %v962 = vand.u32 %v961, 65535
    %v963 = vshrl.u32 %v961, 16
    %v964 = vcvt.s32.f32 %v962
    %v965 = vcvt.s32.f32 %v963
    %966 = vadd.xlane.f32.xlu0 %v964
    %v967 = vpop.xlane.xlu0 %966
    %968 = vadd.xlane.f32.xlu0 %v965
    %v969 = vpop.xlane.xlu0 %968
    %v970 = vcvt.f32.s32 %v967
    %v971 = vcvt.f32.s32 %v969
    %v972 = vshll.u32 %v971, 16
    %v973 = vadd.s32 %v972, %v970
    %v974 = vsel %vm752, %v745, 0
    %v975 = vand.u32 %v974, 65535
    %v976 = vshrl.u32 %v974, 16
    %v977 = vcvt.s32.f32 %v975
    %v978 = vcvt.s32.f32 %v976
    %979 = vadd.xlane.f32.xlu0 %v977
    %v980 = vpop.xlane.xlu0 %979
    %981 = vadd.xlane.f32.xlu0 %v978
    %v982 = vpop.xlane.xlu0 %981
    %v983 = vcvt.f32.s32 %v980
    %v984 = vcvt.f32.s32 %v982
    %v985 = vshll.u32 %v984, 16
    %v986 = vadd.s32 %v985, %v983
    %v987 = vsel %vm752, %v746, 0
    %v988 = vand.u32 %v987, 65535
    %v989 = vshrl.u32 %v987, 16
    %v990 = vcvt.s32.f32 %v988
    %v991 = vcvt.s32.f32 %v989
    %992 = vadd.xlane.f32.xlu0 %v990
    %v993 = vpop.xlane.xlu0 %992
    %994 = vadd.xlane.f32.xlu0 %v991
    %v995 = vpop.xlane.xlu0 %994
    %v996 = vcvt.f32.s32 %v993
    %v997 = vcvt.f32.s32 %v995
    %v998 = vshll.u32 %v997, 16
    %v999 = vadd.s32 %v998, %v996
    %v1000 = vsel %vm752, %v747, 0
    %v1001 = vand.u32 %v1000, 65535
    %v1002 = vshrl.u32 %v1000, 16
    %v1003 = vcvt.s32.f32 %v1001
    %v1004 = vcvt.s32.f32 %v1002
    %1005 = vadd.xlane.f32.xlu0 %v1003
    %v1006 = vpop.xlane.xlu0 %1005
    %1007 = vadd.xlane.f32.xlu0 %v1004
    %v1008 = vpop.xlane.xlu0 %1007
    %v1009 = vcvt.f32.s32 %v1006
    %v1010 = vcvt.f32.s32 %v1008
    %v1011 = vshll.u32 %v1010, 16
    %v1012 = vadd.s32 %v1011, %v1009
    %v1013 = vsel %vm752, %v748, 0
    %v1014 = vand.u32 %v1013, 65535
    %v1015 = vshrl.u32 %v1013, 16
    %v1016 = vcvt.s32.f32 %v1014
    %v1017 = vcvt.s32.f32 %v1015
    %1018 = vadd.xlane.f32.xlu0 %v1016
    %v1019 = vpop.xlane.xlu0 %1018
    %1020 = vadd.xlane.f32.xlu0 %v1017
    %v1021 = vpop.xlane.xlu0 %1020
    %v1022 = vcvt.f32.s32 %v1019
    %v1023 = vcvt.f32.s32 %v1021
    %v1024 = vshll.u32 %v1023, 16
    %v1025 = vadd.s32 %v1024, %v1022
    %v1026 = vsel %vm752, %v749, 0
    %v1027 = vand.u32 %v1026, 65535
    %v1028 = vshrl.u32 %v1026, 16
    %v1029 = vcvt.s32.f32 %v1027
    %v1030 = vcvt.s32.f32 %v1028
    %1031 = vadd.xlane.f32.xlu0 %v1029
    %v1032 = vpop.xlane.xlu0 %1031
    %1033 = vadd.xlane.f32.xlu0 %v1030
    %v1034 = vpop.xlane.xlu0 %1033
    %v1035 = vcvt.f32.s32 %v1032
    %v1036 = vcvt.f32.s32 %v1034
    %v1037 = vshll.u32 %v1036, 16
    %v1038 = vadd.s32 %v1037, %v1035
    %v1039 = vsel %vm752, %v750, 0
    %v1040 = vand.u32 %v1039, 65535
    %v1041 = vshrl.u32 %v1039, 16
    %v1042 = vcvt.s32.f32 %v1040
    %v1043 = vcvt.s32.f32 %v1041
    %1044 = vadd.xlane.f32.xlu0 %v1042
    %v1045 = vpop.xlane.xlu0 %1044
    %1046 = vadd.xlane.f32.xlu0 %v1043
    %v1047 = vpop.xlane.xlu0 %1046
    %v1048 = vcvt.f32.s32 %v1045
    %v1049 = vcvt.f32.s32 %v1047
    %v1050 = vshll.u32 %v1049, 16
    %v1051 = vadd.s32 %v1050, %v1048
    %v1052 = vsel %vm752, %v751, 0
    %v1053 = vand.u32 %v1052, 65535
    %v1054 = vshrl.u32 %v1052, 16
    %v1055 = vcvt.s32.f32 %v1053
    %v1056 = vcvt.s32.f32 %v1054
    %1057 = vadd.xlane.f32.xlu0 %v1055
    %v1058 = vpop.xlane.xlu0 %1057
    %1059 = vadd.xlane.f32.xlu0 %v1056
    %v1060 = vpop.xlane.xlu0 %1059
    %v1061 = vcvt.f32.s32 %v1058
    %v1062 = vcvt.f32.s32 %v1060
    %v1063 = vshll.u32 %v1062, 16
    %v1064 = vadd.s32 %v1063, %v1061
    %vm1065 = vcmp.lt.s32.totalorder %v765, 12
    %vm1066 = vcmp.lt.s32.totalorder %v778, 12
    %vm1067 = vcmp.lt.s32.totalorder %v791, 12
    %vm1068 = vcmp.lt.s32.totalorder %v804, 12
    %vm1069 = vcmp.lt.s32.totalorder %v817, 12
    %vm1070 = vcmp.lt.s32.totalorder %v830, 12
    %vm1071 = vcmp.lt.s32.totalorder %v843, 12
    %vm1072 = vcmp.lt.s32.totalorder %v856, 12
    %vm1073 = vcmp.lt.s32.totalorder %v869, 12
    %vm1074 = vcmp.lt.s32.totalorder %v882, 12
    %vm1075 = vcmp.lt.s32.totalorder %v895, 12
    %vm1076 = vcmp.lt.s32.totalorder %v908, 12
    %vm1077 = vcmp.lt.s32.totalorder %v921, 12
    %vm1078 = vcmp.lt.s32.totalorder %v934, 12
    %vm1079 = vcmp.lt.s32.totalorder %v947, 12
    %vm1080 = vcmp.lt.s32.totalorder %v960, 12
    %vm1081 = vcmp.lt.s32.totalorder %v973, 12
    %vm1082 = vcmp.lt.s32.totalorder %v986, 12
    %vm1083 = vcmp.lt.s32.totalorder %v999, 12
    %vm1084 = vcmp.lt.s32.totalorder %v1012, 12
    %vm1085 = vcmp.lt.s32.totalorder %v1025, 12
    %vm1086 = vcmp.lt.s32.totalorder %v1038, 12
    %vm1087 = vcmp.lt.s32.totalorder %v1051, 12
    %vm1088 = vcmp.lt.s32.totalorder %v1064, 12
    %v1089 = vld [vmem:[%s17] sm:$0xff]
    %v1091 = vperm.slane %v1089, 0
    %v1092 = vperm.slane %v1089, 2
    %v1093 = vperm.slane %v1089, 4
    %v1094 = vperm.slane %v1089, 6
    %v1099 = vperm.slane %v1091, 0
    %v1100 = vperm.slane %v1092, 0
    %v1101 = vperm.slane %v1093, 0
    %v1102 = vperm.slane %v1094, 0
    %v1103 = vmul.f32 %v66, %v1099
    %v1104 = vmul.f32 %v67, %v1100
    %v1105 = vmul.f32 %v68, %v1101
    %v1106 = vmul.f32 %v69, %v1102
    %v1107 = vperm.slane %v1089, 1
    %v1108 = vperm.slane %v1089, 3
    %v1109 = vperm.slane %v1089, 5
    %v1110 = vperm.slane %v1089, 7
    %v1115 = vperm.slane %v1107, 1
    %v1116 = vperm.slane %v1108, 1
    %v1117 = vperm.slane %v1109, 1
    %v1118 = vperm.slane %v1110, 1
    %v1119 = vmul.f32 %v70, %v1115
    %v1120 = vmul.f32 %v71, %v1116
    %v1121 = vmul.f32 %v72, %v1117
    %v1122 = vmul.f32 %v73, %v1118
    %v1123 = vadd.f32 %v1103, %v1119
    %v1124 = vadd.f32 %v1104, %v1120
    %v1125 = vadd.f32 %v1105, %v1121
    %v1126 = vadd.f32 %v1106, %v1122
    %v1127 = vld [vmem:[%s18] sm:$0x3]
    %v1129 = vperm.slane %v1127, 0
    %v1130 = vperm.slane %v1127, 1
    %v1133 = vmul.f32 %v74, %v1129
    %v1134 = vmul.f32 %v75, %v1130
    %1135 = vmatpush.msra.mxu0 %v376
    %1136 = vmatpush.msra.mxu0 %v375
    %1137 = vmatpush.msra.mxu0 %v374
    %1138 = vmatpush.msra.mxu0 %v373
    %1139 = vmatpush.msra.mxu0 %v372
    %1140 = vmatpush.msra.mxu0 %v371
    %1141 = vmatpush.msra.mxu0 %v370
    %1142 = vmatpush.msra.mxu0 %v369
    %1143 = vmatpush.msra.mxu0 %v368
    %1144 = vmatpush.msra.mxu0 %v367
    %1145 = vmatpush.msra.mxu0 %v366
    %1146 = vmatpush.msra.mxu0 %v365
    %1147 = vmatpush.msra.mxu0 %v364
    %1148 = vmatpush.msra.mxu0 %v363
    %1149 = vmatpush.msra.mxu0 %v362
    %1150 = vmatpush.msra.mxu0 %v361
    %1151 = vmatmul.f32.gmra.mxu0 %v1133
    %v1152 = vpop.f32.mrf.mxu0
    %v1153 = vadd.f32 0.0, %v1152
    %1154 = vdwg.mxu0
    %1155 = vmatpush.msra.mxu0 %v392
    %1156 = vmatpush.msra.mxu0 %v391
    %1157 = vmatpush.msra.mxu0 %v390
    %1158 = vmatpush.msra.mxu0 %v389
    %1159 = vmatpush.msra.mxu0 %v388
    %1160 = vmatpush.msra.mxu0 %v387
    %1161 = vmatpush.msra.mxu0 %v386
    %1162 = vmatpush.msra.mxu0 %v385
    %1163 = vmatpush.msra.mxu0 %v384
    %1164 = vmatpush.msra.mxu0 %v383
    %1165 = vmatpush.msra.mxu0 %v382
    %1166 = vmatpush.msra.mxu0 %v381
    %1167 = vmatpush.msra.mxu0 %v380
    %1168 = vmatpush.msra.mxu0 %v379
    %1169 = vmatpush.msra.mxu0 %v378
    %1170 = vmatpush.msra.mxu0 %v377
    %1171 = vmatmul.f32.gmra.mxu0 %v1134
    %v1172 = vpop.f32.mrf.mxu0
    %v1173 = vadd.f32 %v1153, %v1172
    %1174 = vdwg.mxu0
    %1175 = vmatpush.msra.mxu0 %v310
    %1176 = vmatpush.msra.mxu0 %v309
    %1177 = vmatpush.msra.mxu0 %v308
    %1178 = vmatpush.msra.mxu0 %v307
    %1179 = vmatpush.msra.mxu0 %v306
    %1180 = vmatpush.msra.mxu0 %v305
    %1181 = vmatpush.msra.mxu0 %v304
    %1182 = vmatpush.msra.mxu0 %v303
    %1183 = vmatpush.msra.mxu0 %v302
    %1184 = vmatpush.msra.mxu0 %v301
    %1185 = vmatpush.msra.mxu0 %v300
    %1186 = vmatpush.msra.mxu0 %v299
    %1187 = vmatpush.msra.mxu0 %v298
    %1188 = vmatpush.msra.mxu0 %v297
    %1189 = vmatpush.msra.mxu0 %v296
    %1190 = vmatpush.msra.mxu0 %v295
    %1191 = vmatmul.f32.gmra.mxu0 %v1123
    %v1192 = vpop.f32.mrf.mxu0
    %v1193 = vadd.f32 %v1173, %v1192
    %1194 = vdwg.mxu0
    %1195 = vmatpush.msra.mxu0 %v326
    %1196 = vmatpush.msra.mxu0 %v325
    %1197 = vmatpush.msra.mxu0 %v324
    %1198 = vmatpush.msra.mxu0 %v323
    %1199 = vmatpush.msra.mxu0 %v322
    %1200 = vmatpush.msra.mxu0 %v321
    %1201 = vmatpush.msra.mxu0 %v320
    %1202 = vmatpush.msra.mxu0 %v319
    %1203 = vmatpush.msra.mxu0 %v318
    %1204 = vmatpush.msra.mxu0 %v317
    %1205 = vmatpush.msra.mxu0 %v316
    %1206 = vmatpush.msra.mxu0 %v315
    %1207 = vmatpush.msra.mxu0 %v314
    %1208 = vmatpush.msra.mxu0 %v313
    %1209 = vmatpush.msra.mxu0 %v312
    %1210 = vmatpush.msra.mxu0 %v311
    %1211 = vmatmul.f32.gmra.mxu0 %v1124
    %v1212 = vpop.f32.mrf.mxu0
    %v1213 = vadd.f32 %v1193, %v1212
    %1214 = vdwg.mxu0
    %1215 = vmatpush.msra.mxu0 %v342
    %1216 = vmatpush.msra.mxu0 %v341
    %1217 = vmatpush.msra.mxu0 %v340
    %1218 = vmatpush.msra.mxu0 %v339
    %1219 = vmatpush.msra.mxu0 %v338
    %1220 = vmatpush.msra.mxu0 %v337
    %1221 = vmatpush.msra.mxu0 %v336
    %1222 = vmatpush.msra.mxu0 %v335
    %1223 = vmatpush.msra.mxu0 %v334
    %1224 = vmatpush.msra.mxu0 %v333
    %1225 = vmatpush.msra.mxu0 %v332
    %1226 = vmatpush.msra.mxu0 %v331
    %1227 = vmatpush.msra.mxu0 %v330
    %1228 = vmatpush.msra.mxu0 %v329
    %1229 = vmatpush.msra.mxu0 %v328
    %1230 = vmatpush.msra.mxu0 %v327
    %1231 = vmatmul.f32.gmra.mxu0 %v1125
    %v1232 = vpop.f32.mrf.mxu0
    %v1233 = vadd.f32 %v1213, %v1232
    %1234 = vdwg.mxu0
    %1235 = vmatpush.msra.mxu0 %v358
    %1236 = vmatpush.msra.mxu0 %v357
    %1237 = vmatpush.msra.mxu0 %v356
    %1238 = vmatpush.msra.mxu0 %v355
    %1239 = vmatpush.msra.mxu0 %v354
    %1240 = vmatpush.msra.mxu0 %v353
    %1241 = vmatpush.msra.mxu0 %v352
    %1242 = vmatpush.msra.mxu0 %v351
    %1243 = vmatpush.msra.mxu0 %v350
    %1244 = vmatpush.msra.mxu0 %v349
    %1245 = vmatpush.msra.mxu0 %v348
    %1246 = vmatpush.msra.mxu0 %v347
    %1247 = vmatpush.msra.mxu0 %v346
    %1248 = vmatpush.msra.mxu0 %v345
    %1249 = vmatpush.msra.mxu0 %v344
    %1250 = vmatpush.msra.mxu0 %v343
    %1251 = vmatmul.f32.gmra.mxu0 %v1126
    %v1252 = vpop.f32.mrf.mxu0
    %v1253 = vadd.f32 %v1233, %v1252
    %1254 = vdwg.mxu0
    %v1255 = vld [vmem:[%s19] sm:$0x1]
    %v1257 = vperm.slane %v1255, 0
    %v1259 = vadd.f32 %v1253, %v1257
    %v1261 = vperm.slane %v1259, 0
    %v1262 = vlaneseq
    %v1263 = vshrl.u32 %v1262, 7
    %1265 = vset.pattern.permute.xlu0 %v1263
    %1266 = vperm.xlu0 %1265, %v1261
    %v1267 = vpop.permute.xlu0 %1266
    %v1268 = vlaneseq
    %v1269 = vshrl.u32 %v1268, 7
    %v1270 = vadd.s32 %v1269, 8
    %1271 = vset.pattern.permute.xlu0 %v1270
    %1272 = vperm.xlu0 %1271, %v1261
    %v1273 = vpop.permute.xlu0 %1272
    %v1274 = vlaneseq
    %v1275 = vshrl.u32 %v1274, 7
    %v1276 = vadd.s32 %v1275, 16
    %1277 = vset.pattern.permute.xlu0 %v1276
    %1278 = vperm.xlu0 %1277, %v1261
    %v1279 = vpop.permute.xlu0 %1278
    %v1280 = vperm.slane %v1259, 1
    %v1281 = vlaneseq
    %v1282 = vshrl.u32 %v1281, 7
    %1284 = vset.pattern.permute.xlu0 %v1282
    %1285 = vperm.xlu0 %1284, %v1280
    %v1286 = vpop.permute.xlu0 %1285
    %v1287 = vlaneseq
    %v1288 = vshrl.u32 %v1287, 7
    %v1289 = vadd.s32 %v1288, 8
    %1290 = vset.pattern.permute.xlu0 %v1289
    %1291 = vperm.xlu0 %1290, %v1280
    %v1292 = vpop.permute.xlu0 %1291
    %v1293 = vlaneseq
    %v1294 = vshrl.u32 %v1293, 7
    %v1295 = vadd.s32 %v1294, 16
    %1296 = vset.pattern.permute.xlu0 %v1295
    %1297 = vperm.xlu0 %1296, %v1280
    %v1298 = vpop.permute.xlu0 %1297
    %v1299 = vperm.slane %v1259, 2
    %v1300 = vlaneseq
    %v1301 = vshrl.u32 %v1300, 7
    %1303 = vset.pattern.permute.xlu0 %v1301
    %1304 = vperm.xlu0 %1303, %v1299
    %v1305 = vpop.permute.xlu0 %1304
    %v1306 = vlaneseq
    %v1307 = vshrl.u32 %v1306, 7
    %v1308 = vadd.s32 %v1307, 8
    %1309 = vset.pattern.permute.xlu0 %v1308
    %1310 = vperm.xlu0 %1309, %v1299
    %v1311 = vpop.permute.xlu0 %1310
    %v1312 = vlaneseq
    %v1313 = vshrl.u32 %v1312, 7
    %v1314 = vadd.s32 %v1313, 16
    %1315 = vset.pattern.permute.xlu0 %v1314
    %1316 = vperm.xlu0 %1315, %v1299
    %v1317 = vpop.permute.xlu0 %1316
    %v1318 = vperm.slane %v1259, 3
    %v1319 = vlaneseq
    %v1320 = vshrl.u32 %v1319, 7
    %1322 = vset.pattern.permute.xlu0 %v1320
    %1323 = vperm.xlu0 %1322, %v1318
    %v1324 = vpop.permute.xlu0 %1323
    %v1325 = vlaneseq
    %v1326 = vshrl.u32 %v1325, 7
    %v1327 = vadd.s32 %v1326, 8
    %1328 = vset.pattern.permute.xlu0 %v1327
    %1329 = vperm.xlu0 %1328, %v1318
    %v1330 = vpop.permute.xlu0 %1329
    %v1331 = vlaneseq
    %v1332 = vshrl.u32 %v1331, 7
    %v1333 = vadd.s32 %v1332, 16
    %1334 = vset.pattern.permute.xlu0 %v1333
    %1335 = vperm.xlu0 %1334, %v1318
    %v1336 = vpop.permute.xlu0 %1335
    %v1337 = vperm.slane %v1259, 4
    %v1338 = vlaneseq
    %v1339 = vshrl.u32 %v1338, 7
    %1341 = vset.pattern.permute.xlu0 %v1339
    %1342 = vperm.xlu0 %1341, %v1337
    %v1343 = vpop.permute.xlu0 %1342
    %v1344 = vlaneseq
    %v1345 = vshrl.u32 %v1344, 7
    %v1346 = vadd.s32 %v1345, 8
    %1347 = vset.pattern.permute.xlu0 %v1346
    %1348 = vperm.xlu0 %1347, %v1337
    %v1349 = vpop.permute.xlu0 %1348
    %v1350 = vlaneseq
    %v1351 = vshrl.u32 %v1350, 7
    %v1352 = vadd.s32 %v1351, 16
    %1353 = vset.pattern.permute.xlu0 %v1352
    %1354 = vperm.xlu0 %1353, %v1337
    %v1355 = vpop.permute.xlu0 %1354
    %v1356 = vperm.slane %v1259, 5
    %v1357 = vlaneseq
    %v1358 = vshrl.u32 %v1357, 7
    %1360 = vset.pattern.permute.xlu0 %v1358
    %1361 = vperm.xlu0 %1360, %v1356
    %v1362 = vpop.permute.xlu0 %1361
    %v1363 = vlaneseq
    %v1364 = vshrl.u32 %v1363, 7
    %v1365 = vadd.s32 %v1364, 8
    %1366 = vset.pattern.permute.xlu0 %v1365
    %1367 = vperm.xlu0 %1366, %v1356
    %v1368 = vpop.permute.xlu0 %1367
    %v1369 = vlaneseq
    %v1370 = vshrl.u32 %v1369, 7
    %v1371 = vadd.s32 %v1370, 16
    %1372 = vset.pattern.permute.xlu0 %v1371
    %1373 = vperm.xlu0 %1372, %v1356
    %v1374 = vpop.permute.xlu0 %1373
    %v1375 = vperm.slane %v1259, 6
    %v1376 = vlaneseq
    %v1377 = vshrl.u32 %v1376, 7
    %1379 = vset.pattern.permute.xlu0 %v1377
    %1380 = vperm.xlu0 %1379, %v1375
    %v1381 = vpop.permute.xlu0 %1380
    %v1382 = vlaneseq
    %v1383 = vshrl.u32 %v1382, 7
    %v1384 = vadd.s32 %v1383, 8
    %1385 = vset.pattern.permute.xlu0 %v1384
    %1386 = vperm.xlu0 %1385, %v1375
    %v1387 = vpop.permute.xlu0 %1386
    %v1388 = vlaneseq
    %v1389 = vshrl.u32 %v1388, 7
    %v1390 = vadd.s32 %v1389, 16
    %1391 = vset.pattern.permute.xlu0 %v1390
    %1392 = vperm.xlu0 %1391, %v1375
    %v1393 = vpop.permute.xlu0 %1392
    %v1394 = vperm.slane %v1259, 7
    %v1395 = vlaneseq
    %v1396 = vshrl.u32 %v1395, 7
    %1398 = vset.pattern.permute.xlu0 %v1396
    %1399 = vperm.xlu0 %1398, %v1394
    %v1400 = vpop.permute.xlu0 %1399
    %v1401 = vlaneseq
    %v1402 = vshrl.u32 %v1401, 7
    %v1403 = vadd.s32 %v1402, 8
    %1404 = vset.pattern.permute.xlu0 %v1403
    %1405 = vperm.xlu0 %1404, %v1394
    %v1406 = vpop.permute.xlu0 %1405
    %v1407 = vlaneseq
    %v1408 = vshrl.u32 %v1407, 7
    %v1409 = vadd.s32 %v1408, 16
    %1410 = vset.pattern.permute.xlu0 %v1409
    %1411 = vperm.xlu0 %1410, %v1394
    %v1412 = vpop.permute.xlu0 %1411
    %v1437 = vsel %vm1065, %v1267, -1e+30
    %v1438 = vsel %vm1066, %v1273, -1e+30
    %v1439 = vsel %vm1067, %v1279, -1e+30
    %v1440 = vsel %vm1068, %v1286, -1e+30
    %v1441 = vsel %vm1069, %v1292, -1e+30
    %v1442 = vsel %vm1070, %v1298, -1e+30
    %v1443 = vsel %vm1071, %v1305, -1e+30
    %v1444 = vsel %vm1072, %v1311, -1e+30
    %v1445 = vsel %vm1073, %v1317, -1e+30
    %v1446 = vsel %vm1074, %v1324, -1e+30
    %v1447 = vsel %vm1075, %v1330, -1e+30
    %v1448 = vsel %vm1076, %v1336, -1e+30
    %v1449 = vsel %vm1077, %v1343, -1e+30
    %v1450 = vsel %vm1078, %v1349, -1e+30
    %v1451 = vsel %vm1079, %v1355, -1e+30
    %v1452 = vsel %vm1080, %v1362, -1e+30
    %v1453 = vsel %vm1081, %v1368, -1e+30
    %v1454 = vsel %vm1082, %v1374, -1e+30
    %v1455 = vsel %vm1083, %v1381, -1e+30
    %v1456 = vsel %vm1084, %v1387, -1e+30
    %v1457 = vsel %vm1085, %v1393, -1e+30
    %v1458 = vsel %vm1086, %v1400, -1e+30
    %v1459 = vsel %vm1087, %v1406, -1e+30
    %v1460 = vsel %vm1088, %v1412, -1e+30
    %1485 = vset.pattern.permute.xlu0 0
    %1486 = vperm.xlu0 %1485, %v1437
    %v1487 = vpop.permute.xlu0 %1486
    %1488 = vset.pattern.permute.xlu0 0
    %1489 = vperm.xlu0 %1488, %v1438
    %v1490 = vpop.permute.xlu0 %1489
    %1491 = vset.pattern.permute.xlu0 0
    %1492 = vperm.xlu0 %1491, %v1439
    %v1493 = vpop.permute.xlu0 %1492
    %1494 = vset.pattern.permute.xlu0 0
    %1495 = vperm.xlu0 %1494, %v1440
    %v1496 = vpop.permute.xlu0 %1495
    %1497 = vset.pattern.permute.xlu0 0
    %1498 = vperm.xlu0 %1497, %v1441
    %v1499 = vpop.permute.xlu0 %1498
    %1500 = vset.pattern.permute.xlu0 0
    %1501 = vperm.xlu0 %1500, %v1442
    %v1502 = vpop.permute.xlu0 %1501
    %1503 = vset.pattern.permute.xlu0 0
    %1504 = vperm.xlu0 %1503, %v1443
    %v1505 = vpop.permute.xlu0 %1504
    %1506 = vset.pattern.permute.xlu0 0
    %1507 = vperm.xlu0 %1506, %v1444
    %v1508 = vpop.permute.xlu0 %1507
    %1509 = vset.pattern.permute.xlu0 0
    %1510 = vperm.xlu0 %1509, %v1445
    %v1511 = vpop.permute.xlu0 %1510
    %1512 = vset.pattern.permute.xlu0 0
    %1513 = vperm.xlu0 %1512, %v1446
    %v1514 = vpop.permute.xlu0 %1513
    %1515 = vset.pattern.permute.xlu0 0
    %1516 = vperm.xlu0 %1515, %v1447
    %v1517 = vpop.permute.xlu0 %1516
    %1518 = vset.pattern.permute.xlu0 0
    %1519 = vperm.xlu0 %1518, %v1448
    %v1520 = vpop.permute.xlu0 %1519
    %1521 = vset.pattern.permute.xlu0 0
    %1522 = vperm.xlu0 %1521, %v1449
    %v1523 = vpop.permute.xlu0 %1522
    %1524 = vset.pattern.permute.xlu0 0
    %1525 = vperm.xlu0 %1524, %v1450
    %v1526 = vpop.permute.xlu0 %1525
    %1527 = vset.pattern.permute.xlu0 0
    %1528 = vperm.xlu0 %1527, %v1451
    %v1529 = vpop.permute.xlu0 %1528
    %1530 = vset.pattern.permute.xlu0 0
    %1531 = vperm.xlu0 %1530, %v1452
    %v1532 = vpop.permute.xlu0 %1531
    %1533 = vset.pattern.permute.xlu0 0
    %1534 = vperm.xlu0 %1533, %v1453
    %v1535 = vpop.permute.xlu0 %1534
    %1536 = vset.pattern.permute.xlu0 0
    %1537 = vperm.xlu0 %1536, %v1454
    %v1538 = vpop.permute.xlu0 %1537
    %1539 = vset.pattern.permute.xlu0 0
    %1540 = vperm.xlu0 %1539, %v1455
    %v1541 = vpop.permute.xlu0 %1540
    %1542 = vset.pattern.permute.xlu0 0
    %1543 = vperm.xlu0 %1542, %v1456
    %v1544 = vpop.permute.xlu0 %1543
    %1545 = vset.pattern.permute.xlu0 0
    %1546 = vperm.xlu0 %1545, %v1457
    %v1547 = vpop.permute.xlu0 %1546
    %1548 = vset.pattern.permute.xlu0 0
    %1549 = vperm.xlu0 %1548, %v1458
    %v1550 = vpop.permute.xlu0 %1549
    %1551 = vset.pattern.permute.xlu0 0
    %1552 = vperm.xlu0 %1551, %v1459
    %v1553 = vpop.permute.xlu0 %1552
    %1554 = vset.pattern.permute.xlu0 0
    %1555 = vperm.xlu0 %1554, %v1460
    %v1556 = vpop.permute.xlu0 %1555
    %v1557 = vlaneseq
    %v1558 = vand.u32 %v1557, 127
    %v1559 = vperm.slane %v1487, %v1558
    %v1560 = vadd.s32 %v1558, 4294967288
    %v1561 = vperm.slane %v1490, %v1560
    %vm1562 = vcmask 130112
    %v1563 = vsel %vm1562, %v1561, %v1559
    %v1564 = vadd.s32 %v1558, 4294967280
    %v1565 = vperm.slane %v1493, %v1564
    %vm1566 = vcmask 195712
    %v1567 = vsel %vm1566, %v1565, %v1563
    %v1568 = vperm.slane %v1496, %v1558
    %v1569 = vperm.slane %v1499, %v1560
    %v1570 = vsel %vm1562, %v1569, %v1568
    %v1571 = vperm.slane %v1502, %v1564
    %v1572 = vsel %vm1566, %v1571, %v1570
    %v1573 = vperm.slane %v1505, %v1558
    %v1574 = vperm.slane %v1508, %v1560
    %v1575 = vsel %vm1562, %v1574, %v1573
    %v1576 = vperm.slane %v1511, %v1564
    %v1577 = vsel %vm1566, %v1576, %v1575
    %v1578 = vperm.slane %v1514, %v1558
    %v1579 = vperm.slane %v1517, %v1560
    %v1580 = vsel %vm1562, %v1579, %v1578
    %v1581 = vperm.slane %v1520, %v1564
    %v1582 = vsel %vm1566, %v1581, %v1580
    %v1583 = vperm.slane %v1523, %v1558
    %v1584 = vperm.slane %v1526, %v1560
    %v1585 = vsel %vm1562, %v1584, %v1583
    %v1586 = vperm.slane %v1529, %v1564
    %v1587 = vsel %vm1566, %v1586, %v1585
    %v1588 = vperm.slane %v1532, %v1558
    %v1589 = vperm.slane %v1535, %v1560
    %v1590 = vsel %vm1562, %v1589, %v1588
    %v1591 = vperm.slane %v1538, %v1564
    %v1592 = vsel %vm1566, %v1591, %v1590
    %v1593 = vperm.slane %v1541, %v1558
    %v1594 = vperm.slane %v1544, %v1560
    %v1595 = vsel %vm1562, %v1594, %v1593
    %v1596 = vperm.slane %v1547, %v1564
    %v1597 = vsel %vm1566, %v1596, %v1595
    %v1598 = vperm.slane %v1550, %v1558
    %v1599 = vperm.slane %v1553, %v1560
    %v1600 = vsel %vm1562, %v1599, %v1598
    %v1601 = vperm.slane %v1556, %v1564
    %v1602 = vsel %vm1566, %v1601, %v1600
    %vm1603 = vcmask 1041409
    %v1604 = vsel %vm1603, %v1572, %v1567
    %vm1605 = vcmask 1042434
    %v1606 = vsel %vm1605, %v1577, %v1604
    %vm1607 = vcmask 1043459
    %v1608 = vsel %vm1607, %v1582, %v1606
    %vm1609 = vcmask 1044484
    %v1610 = vsel %vm1609, %v1587, %v1608
    %vm1611 = vcmask 1045509
    %v1612 = vsel %vm1611, %v1592, %v1610
    %vm1613 = vcmask 1046534
    %v1614 = vsel %vm1613, %v1597, %v1612
    %vm1615 = vcmask 1047559
    %v1616 = vsel %vm1615, %v1602, %v1614
    %v1618 = vsel %vm752, %v1616, -inf
    %1619 = vmax.xlane.f32.xlu0 %v1618
    %v1620 = vpop.xlane.xlu0 %1619
    %v1622 = vperm.slane %v1620, 0
    %v1623 = vperm.slane %v1620, 1
    %v1624 = vperm.slane %v1620, 2
    %v1625 = vperm.slane %v1620, 3
    %v1626 = vperm.slane %v1620, 4
    %v1627 = vperm.slane %v1620, 5
    %v1628 = vperm.slane %v1620, 6
    %v1629 = vperm.slane %v1620, 7
    %v1638 = vsub.f32 %v1437, %v1622
    %v1639 = vsub.f32 %v1438, %v1622
    %v1640 = vsub.f32 %v1439, %v1622
    %v1641 = vsub.f32 %v1440, %v1623
    %v1642 = vsub.f32 %v1441, %v1623
    %v1643 = vsub.f32 %v1442, %v1623
    %v1644 = vsub.f32 %v1443, %v1624
    %v1645 = vsub.f32 %v1444, %v1624
    %v1646 = vsub.f32 %v1445, %v1624
    %v1647 = vsub.f32 %v1446, %v1625
    %v1648 = vsub.f32 %v1447, %v1625
    %v1649 = vsub.f32 %v1448, %v1625
    %v1650 = vsub.f32 %v1449, %v1626
    %v1651 = vsub.f32 %v1450, %v1626
    %v1652 = vsub.f32 %v1451, %v1626
    %v1653 = vsub.f32 %v1452, %v1627
    %v1654 = vsub.f32 %v1453, %v1627
    %v1655 = vsub.f32 %v1454, %v1627
    %v1656 = vsub.f32 %v1455, %v1628
    %v1657 = vsub.f32 %v1456, %v1628
    %v1658 = vsub.f32 %v1457, %v1628
    %v1659 = vsub.f32 %v1458, %v1629
    %v1660 = vsub.f32 %v1459, %v1629
    %v1661 = vsub.f32 %v1460, %v1629
    %v1662 = vmul.f32 %v1638, 1.442695
    %v1663 = vpow.pop %v1662
    %v1664 = vmul.f32 %v1639, 1.442695
    %v1665 = vpow.pop %v1664
    %v1666 = vmul.f32 %v1640, 1.442695
    %v1667 = vpow.pop %v1666
    %v1668 = vmul.f32 %v1641, 1.442695
    %v1669 = vpow.pop %v1668
    %v1670 = vmul.f32 %v1642, 1.442695
    %v1671 = vpow.pop %v1670
    %v1672 = vmul.f32 %v1643, 1.442695
    %v1673 = vpow.pop %v1672
    %v1674 = vmul.f32 %v1644, 1.442695
    %v1675 = vpow.pop %v1674
    %v1676 = vmul.f32 %v1645, 1.442695
    %v1677 = vpow.pop %v1676
    %v1678 = vmul.f32 %v1646, 1.442695
    %v1679 = vpow.pop %v1678
    %v1680 = vmul.f32 %v1647, 1.442695
    %v1681 = vpow.pop %v1680
    %v1682 = vmul.f32 %v1648, 1.442695
    %v1683 = vpow.pop %v1682
    %v1684 = vmul.f32 %v1649, 1.442695
    %v1685 = vpow.pop %v1684
    %v1686 = vmul.f32 %v1650, 1.442695
    %v1687 = vpow.pop %v1686
    %v1688 = vmul.f32 %v1651, 1.442695
    %v1689 = vpow.pop %v1688
    %v1690 = vmul.f32 %v1652, 1.442695
    %v1691 = vpow.pop %v1690
    %v1692 = vmul.f32 %v1653, 1.442695
    %v1693 = vpow.pop %v1692
    %v1694 = vmul.f32 %v1654, 1.442695
    %v1695 = vpow.pop %v1694
    %v1696 = vmul.f32 %v1655, 1.442695
    %v1697 = vpow.pop %v1696
    %v1698 = vmul.f32 %v1656, 1.442695
    %v1699 = vpow.pop %v1698
    %v1700 = vmul.f32 %v1657, 1.442695
    %v1701 = vpow.pop %v1700
    %v1702 = vmul.f32 %v1658, 1.442695
    %v1703 = vpow.pop %v1702
    %v1704 = vmul.f32 %v1659, 1.442695
    %v1705 = vpow.pop %v1704
    %v1706 = vmul.f32 %v1660, 1.442695
    %v1707 = vpow.pop %v1706
    %v1708 = vmul.f32 %v1661, 1.442695
    %v1709 = vpow.pop %v1708
    %v1710 = vsel %vm1065, 1, 0
    %v1711 = vsel %vm1066, 1, 0
    %v1712 = vsel %vm1067, 1, 0
    %v1713 = vsel %vm1068, 1, 0
    %v1714 = vsel %vm1069, 1, 0
    %v1715 = vsel %vm1070, 1, 0
    %v1716 = vsel %vm1071, 1, 0
    %v1717 = vsel %vm1072, 1, 0
    %v1718 = vsel %vm1073, 1, 0
    %v1719 = vsel %vm1074, 1, 0
    %v1720 = vsel %vm1075, 1, 0
    %v1721 = vsel %vm1076, 1, 0
    %v1722 = vsel %vm1077, 1, 0
    %v1723 = vsel %vm1078, 1, 0
    %v1724 = vsel %vm1079, 1, 0
    %v1725 = vsel %vm1080, 1, 0
    %v1726 = vsel %vm1081, 1, 0
    %v1727 = vsel %vm1082, 1, 0
    %v1728 = vsel %vm1083, 1, 0
    %v1729 = vsel %vm1084, 1, 0
    %v1730 = vsel %vm1085, 1, 0
    %v1731 = vsel %vm1086, 1, 0
    %v1732 = vsel %vm1087, 1, 0
    %v1733 = vsel %vm1088, 1, 0
    %v1734 = vcvt.s32.f32 %v1710
    %v1735 = vcvt.s32.f32 %v1711
    %v1736 = vcvt.s32.f32 %v1712
    %v1737 = vcvt.s32.f32 %v1713
    %v1738 = vcvt.s32.f32 %v1714
    %v1739 = vcvt.s32.f32 %v1715
    %v1740 = vcvt.s32.f32 %v1716
    %v1741 = vcvt.s32.f32 %v1717
    %v1742 = vcvt.s32.f32 %v1718
    %v1743 = vcvt.s32.f32 %v1719
    %v1744 = vcvt.s32.f32 %v1720
    %v1745 = vcvt.s32.f32 %v1721
    %v1746 = vcvt.s32.f32 %v1722
    %v1747 = vcvt.s32.f32 %v1723
    %v1748 = vcvt.s32.f32 %v1724
    %v1749 = vcvt.s32.f32 %v1725
    %v1750 = vcvt.s32.f32 %v1726
    %v1751 = vcvt.s32.f32 %v1727
    %v1752 = vcvt.s32.f32 %v1728
    %v1753 = vcvt.s32.f32 %v1729
    %v1754 = vcvt.s32.f32 %v1730
    %v1755 = vcvt.s32.f32 %v1731
    %v1756 = vcvt.s32.f32 %v1732
    %v1757 = vcvt.s32.f32 %v1733
    %v1758 = vmul.f32 %v1663, %v1734
    %v1759 = vmul.f32 %v1665, %v1735
    %v1760 = vmul.f32 %v1667, %v1736
    %v1761 = vmul.f32 %v1669, %v1737
    %v1762 = vmul.f32 %v1671, %v1738
    %v1763 = vmul.f32 %v1673, %v1739
    %v1764 = vmul.f32 %v1675, %v1740
    %v1765 = vmul.f32 %v1677, %v1741
    %v1766 = vmul.f32 %v1679, %v1742
    %v1767 = vmul.f32 %v1681, %v1743
    %v1768 = vmul.f32 %v1683, %v1744
    %v1769 = vmul.f32 %v1685, %v1745
    %v1770 = vmul.f32 %v1687, %v1746
    %v1771 = vmul.f32 %v1689, %v1747
    %v1772 = vmul.f32 %v1691, %v1748
    %v1773 = vmul.f32 %v1693, %v1749
    %v1774 = vmul.f32 %v1695, %v1750
    %v1775 = vmul.f32 %v1697, %v1751
    %v1776 = vmul.f32 %v1699, %v1752
    %v1777 = vmul.f32 %v1701, %v1753
    %v1778 = vmul.f32 %v1703, %v1754
    %v1779 = vmul.f32 %v1705, %v1755
    %v1780 = vmul.f32 %v1707, %v1756
    %v1781 = vmul.f32 %v1709, %v1757
    %1806 = vset.pattern.permute.xlu0 0
    %1807 = vperm.xlu0 %1806, %v1758
    %v1808 = vpop.permute.xlu0 %1807
    %1809 = vset.pattern.permute.xlu0 0
    %1810 = vperm.xlu0 %1809, %v1759
    %v1811 = vpop.permute.xlu0 %1810
    %1812 = vset.pattern.permute.xlu0 0
    %1813 = vperm.xlu0 %1812, %v1760
    %v1814 = vpop.permute.xlu0 %1813
    %1815 = vset.pattern.permute.xlu0 0
    %1816 = vperm.xlu0 %1815, %v1761
    %v1817 = vpop.permute.xlu0 %1816
    %1818 = vset.pattern.permute.xlu0 0
    %1819 = vperm.xlu0 %1818, %v1762
    %v1820 = vpop.permute.xlu0 %1819
    %1821 = vset.pattern.permute.xlu0 0
    %1822 = vperm.xlu0 %1821, %v1763
    %v1823 = vpop.permute.xlu0 %1822
    %1824 = vset.pattern.permute.xlu0 0
    %1825 = vperm.xlu0 %1824, %v1764
    %v1826 = vpop.permute.xlu0 %1825
    %1827 = vset.pattern.permute.xlu0 0
    %1828 = vperm.xlu0 %1827, %v1765
    %v1829 = vpop.permute.xlu0 %1828
    %1830 = vset.pattern.permute.xlu0 0
    %1831 = vperm.xlu0 %1830, %v1766
    %v1832 = vpop.permute.xlu0 %1831
    %1833 = vset.pattern.permute.xlu0 0
    %1834 = vperm.xlu0 %1833, %v1767
    %v1835 = vpop.permute.xlu0 %1834
    %1836 = vset.pattern.permute.xlu0 0
    %1837 = vperm.xlu0 %1836, %v1768
    %v1838 = vpop.permute.xlu0 %1837
    %1839 = vset.pattern.permute.xlu0 0
    %1840 = vperm.xlu0 %1839, %v1769
    %v1841 = vpop.permute.xlu0 %1840
    %1842 = vset.pattern.permute.xlu0 0
    %1843 = vperm.xlu0 %1842, %v1770
    %v1844 = vpop.permute.xlu0 %1843
    %1845 = vset.pattern.permute.xlu0 0
    %1846 = vperm.xlu0 %1845, %v1771
    %v1847 = vpop.permute.xlu0 %1846
    %1848 = vset.pattern.permute.xlu0 0
    %1849 = vperm.xlu0 %1848, %v1772
    %v1850 = vpop.permute.xlu0 %1849
    %1851 = vset.pattern.permute.xlu0 0
    %1852 = vperm.xlu0 %1851, %v1773
    %v1853 = vpop.permute.xlu0 %1852
    %1854 = vset.pattern.permute.xlu0 0
    %1855 = vperm.xlu0 %1854, %v1774
    %v1856 = vpop.permute.xlu0 %1855
    %1857 = vset.pattern.permute.xlu0 0
    %1858 = vperm.xlu0 %1857, %v1775
    %v1859 = vpop.permute.xlu0 %1858
    %1860 = vset.pattern.permute.xlu0 0
    %1861 = vperm.xlu0 %1860, %v1776
    %v1862 = vpop.permute.xlu0 %1861
    %1863 = vset.pattern.permute.xlu0 0
    %1864 = vperm.xlu0 %1863, %v1777
    %v1865 = vpop.permute.xlu0 %1864
    %1866 = vset.pattern.permute.xlu0 0
    %1867 = vperm.xlu0 %1866, %v1778
    %v1868 = vpop.permute.xlu0 %1867
    %1869 = vset.pattern.permute.xlu0 0
    %1870 = vperm.xlu0 %1869, %v1779
    %v1871 = vpop.permute.xlu0 %1870
    %1872 = vset.pattern.permute.xlu0 0
    %1873 = vperm.xlu0 %1872, %v1780
    %v1874 = vpop.permute.xlu0 %1873
    %1875 = vset.pattern.permute.xlu0 0
    %1876 = vperm.xlu0 %1875, %v1781
    %v1877 = vpop.permute.xlu0 %1876
    %v1878 = vperm.slane %v1808, %v1558
    %v1879 = vperm.slane %v1811, %v1560
    %v1880 = vsel %vm1562, %v1879, %v1878
    %v1881 = vperm.slane %v1814, %v1564
    %v1882 = vsel %vm1566, %v1881, %v1880
    %v1883 = vperm.slane %v1817, %v1558
    %v1884 = vperm.slane %v1820, %v1560
    %v1885 = vsel %vm1562, %v1884, %v1883
    %v1886 = vperm.slane %v1823, %v1564
    %v1887 = vsel %vm1566, %v1886, %v1885
    %v1888 = vperm.slane %v1826, %v1558
    %v1889 = vperm.slane %v1829, %v1560
    %v1890 = vsel %vm1562, %v1889, %v1888
    %v1891 = vperm.slane %v1832, %v1564
    %v1892 = vsel %vm1566, %v1891, %v1890
    %v1893 = vperm.slane %v1835, %v1558
    %v1894 = vperm.slane %v1838, %v1560
    %v1895 = vsel %vm1562, %v1894, %v1893
    %v1896 = vperm.slane %v1841, %v1564
    %v1897 = vsel %vm1566, %v1896, %v1895
    %v1898 = vperm.slane %v1844, %v1558
    %v1899 = vperm.slane %v1847, %v1560
    %v1900 = vsel %vm1562, %v1899, %v1898
    %v1901 = vperm.slane %v1850, %v1564
    %v1902 = vsel %vm1566, %v1901, %v1900
    %v1903 = vperm.slane %v1853, %v1558
    %v1904 = vperm.slane %v1856, %v1560
    %v1905 = vsel %vm1562, %v1904, %v1903
    %v1906 = vperm.slane %v1859, %v1564
    %v1907 = vsel %vm1566, %v1906, %v1905
    %v1908 = vperm.slane %v1862, %v1558
    %v1909 = vperm.slane %v1865, %v1560
    %v1910 = vsel %vm1562, %v1909, %v1908
    %v1911 = vperm.slane %v1868, %v1564
    %v1912 = vsel %vm1566, %v1911, %v1910
    %v1913 = vperm.slane %v1871, %v1558
    %v1914 = vperm.slane %v1874, %v1560
    %v1915 = vsel %vm1562, %v1914, %v1913
    %v1916 = vperm.slane %v1877, %v1564
    %v1917 = vsel %vm1566, %v1916, %v1915
    %v1918 = vsel %vm1603, %v1887, %v1882
    %v1919 = vsel %vm1605, %v1892, %v1918
    %v1920 = vsel %vm1607, %v1897, %v1919
    %v1921 = vsel %vm1609, %v1902, %v1920
    %v1922 = vsel %vm1611, %v1907, %v1921
    %v1923 = vsel %vm1613, %v1912, %v1922
    %v1924 = vsel %vm1615, %v1917, %v1923
    %v1926 = vsel %vm752, %v1924, 0.0
    %1927 = vadd.xlane.f32.xlu0 %v1926
    %v1928 = vpop.xlane.xlu0 %1927
    %v1929 = vrcp.pop %v1928
    %v1931 = vperm.slane %v1929, 0
    %v1932 = vperm.slane %v1929, 1
    %v1933 = vperm.slane %v1929, 2
    %v1934 = vperm.slane %v1929, 3
    %v1935 = vperm.slane %v1929, 4
    %v1936 = vperm.slane %v1929, 5
    %v1937 = vperm.slane %v1929, 6
    %v1938 = vperm.slane %v1929, 7
    %v1947 = vmul.f32 %v1758, %v1931
    %v1948 = vmul.f32 %v1759, %v1931
    %v1949 = vmul.f32 %v1760, %v1931
    %v1950 = vmul.f32 %v1761, %v1932
    %v1951 = vmul.f32 %v1762, %v1932
    %v1952 = vmul.f32 %v1763, %v1932
    %v1953 = vmul.f32 %v1764, %v1933
    %v1954 = vmul.f32 %v1765, %v1933
    %v1955 = vmul.f32 %v1766, %v1933
    %v1956 = vmul.f32 %v1767, %v1934
    %v1957 = vmul.f32 %v1768, %v1934
    %v1958 = vmul.f32 %v1769, %v1934
    %v1959 = vmul.f32 %v1770, %v1935
    %v1960 = vmul.f32 %v1771, %v1935
    %v1961 = vmul.f32 %v1772, %v1935
    %v1962 = vmul.f32 %v1773, %v1936
    %v1963 = vmul.f32 %v1774, %v1936
    %v1964 = vmul.f32 %v1775, %v1936
    %v1965 = vmul.f32 %v1776, %v1937
    %v1966 = vmul.f32 %v1777, %v1937
    %v1967 = vmul.f32 %v1778, %v1937
    %v1968 = vmul.f32 %v1779, %v1938
    %v1969 = vmul.f32 %v1780, %v1938
    %v1970 = vmul.f32 %v1781, %v1938
    %v1971 = vld [vmem:[%s13] sm:$0xff]
    %v1972 = vld [vmem:[%s13 + $0x8] sm:$0xff]
    %v1973 = vld [vmem:[%s13 + $0x10] sm:$0xff]
    %v1974 = vld [vmem:[%s13 + $0x18] sm:$0xff]
    %v1975 = vld [vmem:[%s13 + $0x20] sm:$0xff]
    %v1976 = vld [vmem:[%s13 + $0x28] sm:$0xff]
    %v1977 = vld [vmem:[%s13 + $0x30] sm:$0xff]
    %v1978 = vld [vmem:[%s13 + $0x38] sm:$0xff]
    %v1979 = vld [vmem:[%s13 + $0x40] sm:$0xff]
    %v1980 = vld [vmem:[%s13 + $0x48] sm:$0xff]
    %v1981 = vld [vmem:[%s13 + $0x50] sm:$0xff]
    %v1982 = vld [vmem:[%s13 + $0x58] sm:$0xff]
    %2007 = vset.pattern.permute.xlu0 0
    %2008 = vperm.xlu0 %2007, %v1947
    %v2009 = vpop.permute.xlu0 %2008
    %2010 = vset.pattern.permute.xlu0 0
    %2011 = vperm.xlu0 %2010, %v1948
    %v2012 = vpop.permute.xlu0 %2011
    %2013 = vset.pattern.permute.xlu0 0
    %2014 = vperm.xlu0 %2013, %v1949
    %v2015 = vpop.permute.xlu0 %2014
    %2016 = vset.pattern.permute.xlu0 0
    %2017 = vperm.xlu0 %2016, %v1950
    %v2018 = vpop.permute.xlu0 %2017
    %2019 = vset.pattern.permute.xlu0 0
    %2020 = vperm.xlu0 %2019, %v1951
    %v2021 = vpop.permute.xlu0 %2020
    %2022 = vset.pattern.permute.xlu0 0
    %2023 = vperm.xlu0 %2022, %v1952
    %v2024 = vpop.permute.xlu0 %2023
    %2025 = vset.pattern.permute.xlu0 0
    %2026 = vperm.xlu0 %2025, %v1953
    %v2027 = vpop.permute.xlu0 %2026
    %2028 = vset.pattern.permute.xlu0 0
    %2029 = vperm.xlu0 %2028, %v1954
    %v2030 = vpop.permute.xlu0 %2029
    %2031 = vset.pattern.permute.xlu0 0
    %2032 = vperm.xlu0 %2031, %v1955
    %v2033 = vpop.permute.xlu0 %2032
    %2034 = vset.pattern.permute.xlu0 0
    %2035 = vperm.xlu0 %2034, %v1956
    %v2036 = vpop.permute.xlu0 %2035
    %2037 = vset.pattern.permute.xlu0 0
    %2038 = vperm.xlu0 %2037, %v1957
    %v2039 = vpop.permute.xlu0 %2038
    %2040 = vset.pattern.permute.xlu0 0
    %2041 = vperm.xlu0 %2040, %v1958
    %v2042 = vpop.permute.xlu0 %2041
    %2043 = vset.pattern.permute.xlu0 0
    %2044 = vperm.xlu0 %2043, %v1959
    %v2045 = vpop.permute.xlu0 %2044
    %2046 = vset.pattern.permute.xlu0 0
    %2047 = vperm.xlu0 %2046, %v1960
    %v2048 = vpop.permute.xlu0 %2047
    %2049 = vset.pattern.permute.xlu0 0
    %2050 = vperm.xlu0 %2049, %v1961
    %v2051 = vpop.permute.xlu0 %2050
    %2052 = vset.pattern.permute.xlu0 0
    %2053 = vperm.xlu0 %2052, %v1962
    %v2054 = vpop.permute.xlu0 %2053
    %2055 = vset.pattern.permute.xlu0 0
    %2056 = vperm.xlu0 %2055, %v1963
    %v2057 = vpop.permute.xlu0 %2056
    %2058 = vset.pattern.permute.xlu0 0
    %2059 = vperm.xlu0 %2058, %v1964
    %v2060 = vpop.permute.xlu0 %2059
    %2061 = vset.pattern.permute.xlu0 0
    %2062 = vperm.xlu0 %2061, %v1965
    %v2063 = vpop.permute.xlu0 %2062
    %2064 = vset.pattern.permute.xlu0 0
    %2065 = vperm.xlu0 %2064, %v1966
    %v2066 = vpop.permute.xlu0 %2065
    %2067 = vset.pattern.permute.xlu0 0
    %2068 = vperm.xlu0 %2067, %v1967
    %v2069 = vpop.permute.xlu0 %2068
    %2070 = vset.pattern.permute.xlu0 0
    %2071 = vperm.xlu0 %2070, %v1968
    %v2072 = vpop.permute.xlu0 %2071
    %2073 = vset.pattern.permute.xlu0 0
    %2074 = vperm.xlu0 %2073, %v1969
    %v2075 = vpop.permute.xlu0 %2074
    %2076 = vset.pattern.permute.xlu0 0
    %2077 = vperm.xlu0 %2076, %v1970
    %v2078 = vpop.permute.xlu0 %2077
    %v2079 = vperm.slane %v2009, %v1558
    %v2080 = vperm.slane %v2012, %v1560
    %v2081 = vsel %vm1562, %v2080, %v2079
    %v2082 = vperm.slane %v2015, %v1564
    %v2083 = vsel %vm1566, %v2082, %v2081
    %v2084 = vperm.slane %v2018, %v1558
    %v2085 = vperm.slane %v2021, %v1560
    %v2086 = vsel %vm1562, %v2085, %v2084
    %v2087 = vperm.slane %v2024, %v1564
    %v2088 = vsel %vm1566, %v2087, %v2086
    %v2089 = vperm.slane %v2027, %v1558
    %v2090 = vperm.slane %v2030, %v1560
    %v2091 = vsel %vm1562, %v2090, %v2089
    %v2092 = vperm.slane %v2033, %v1564
    %v2093 = vsel %vm1566, %v2092, %v2091
    %v2094 = vperm.slane %v2036, %v1558
    %v2095 = vperm.slane %v2039, %v1560
    %v2096 = vsel %vm1562, %v2095, %v2094
    %v2097 = vperm.slane %v2042, %v1564
    %v2098 = vsel %vm1566, %v2097, %v2096
    %v2099 = vperm.slane %v2045, %v1558
    %v2100 = vperm.slane %v2048, %v1560
    %v2101 = vsel %vm1562, %v2100, %v2099
    %v2102 = vperm.slane %v2051, %v1564
    %v2103 = vsel %vm1566, %v2102, %v2101
    %v2104 = vperm.slane %v2054, %v1558
    %v2105 = vperm.slane %v2057, %v1560
    %v2106 = vsel %vm1562, %v2105, %v2104
    %v2107 = vperm.slane %v2060, %v1564
    %v2108 = vsel %vm1566, %v2107, %v2106
    %v2109 = vperm.slane %v2063, %v1558
    %v2110 = vperm.slane %v2066, %v1560
    %v2111 = vsel %vm1562, %v2110, %v2109
    %v2112 = vperm.slane %v2069, %v1564
    %v2113 = vsel %vm1566, %v2112, %v2111
    %v2114 = vperm.slane %v2072, %v1558
    %v2115 = vperm.slane %v2075, %v1560
    %v2116 = vsel %vm1562, %v2115, %v2114
    %v2117 = vperm.slane %v2078, %v1564
    %v2118 = vsel %vm1566, %v2117, %v2116
    %v2119 = vsel %vm1603, %v2088, %v2083
    %v2120 = vsel %vm1605, %v2093, %v2119
    %v2121 = vsel %vm1607, %v2098, %v2120
    %v2122 = vsel %vm1609, %v2103, %v2121
    %v2123 = vsel %vm1611, %v2108, %v2122
    %v2124 = vsel %vm1613, %v2113, %v2123
    %v2125 = vsel %vm1615, %v2118, %v2124
    %v2126 = vsel %vm752, %v2125, 0
    %2128 = vmatpush.msra.mxu0 0.0
    %2129 = vmatpush.msra.mxu0 0.0
    %2130 = vmatpush.msra.mxu0 0.0
    %2131 = vmatpush.msra.mxu0 0.0
    %2132 = vmatpush.msra.mxu0 0.0
    %2133 = vmatpush.msra.mxu0 0.0
    %2134 = vmatpush.msra.mxu0 0.0
    %2135 = vmatpush.msra.mxu0 0.0
    %2136 = vmatpush.msra.mxu0 0.0
    %2137 = vmatpush.msra.mxu0 0.0
    %2138 = vmatpush.msra.mxu0 0.0
    %2139 = vmatpush.msra.mxu0 0.0
    %2140 = vmatpush.msra.mxu0 0.0
    %2141 = vmatpush.msra.mxu0 %v1979
    %2142 = vmatpush.msra.mxu0 %v1975
    %2143 = vmatpush.msra.mxu0 %v1971
    %2144 = vmatmul.f32.gmra.mxu0 %v2126
    %v2145 = vpop.f32.mrf.mxu0
    %v2146 = vadd.f32 0.0, %v2145
    %2147 = vdwg.mxu0
    %2148 = vmatpush.msra.mxu0 0.0
    %2149 = vmatpush.msra.mxu0 0.0
    %2150 = vmatpush.msra.mxu0 0.0
    %2151 = vmatpush.msra.mxu0 0.0
    %2152 = vmatpush.msra.mxu0 0.0
    %2153 = vmatpush.msra.mxu0 0.0
    %2154 = vmatpush.msra.mxu0 0.0
    %2155 = vmatpush.msra.mxu0 0.0
    %2156 = vmatpush.msra.mxu0 0.0
    %2157 = vmatpush.msra.mxu0 0.0
    %2158 = vmatpush.msra.mxu0 0.0
    %2159 = vmatpush.msra.mxu0 0.0
    %2160 = vmatpush.msra.mxu0 0.0
    %2161 = vmatpush.msra.mxu0 %v1980
    %2162 = vmatpush.msra.mxu0 %v1976
    %2163 = vmatpush.msra.mxu0 %v1972
    %2164 = vmatmul.f32.gmra.mxu0 %v2126
    %v2165 = vpop.f32.mrf.mxu0
    %v2166 = vadd.f32 0.0, %v2165
    %2167 = vdwg.mxu0
    %2168 = vmatpush.msra.mxu0 0.0
    %2169 = vmatpush.msra.mxu0 0.0
    %2170 = vmatpush.msra.mxu0 0.0
    %2171 = vmatpush.msra.mxu0 0.0
    %2172 = vmatpush.msra.mxu0 0.0
    %2173 = vmatpush.msra.mxu0 0.0
    %2174 = vmatpush.msra.mxu0 0.0
    %2175 = vmatpush.msra.mxu0 0.0
    %2176 = vmatpush.msra.mxu0 0.0
    %2177 = vmatpush.msra.mxu0 0.0
    %2178 = vmatpush.msra.mxu0 0.0
    %2179 = vmatpush.msra.mxu0 0.0
    %2180 = vmatpush.msra.mxu0 0.0
    %2181 = vmatpush.msra.mxu0 %v1981
    %2182 = vmatpush.msra.mxu0 %v1977
    %2183 = vmatpush.msra.mxu0 %v1973
    %2184 = vmatmul.f32.gmra.mxu0 %v2126
    %v2185 = vpop.f32.mrf.mxu0
    %v2186 = vadd.f32 0.0, %v2185
    %2187 = vdwg.mxu0
    %2188 = vmatpush.msra.mxu0 0.0
    %2189 = vmatpush.msra.mxu0 0.0
    %2190 = vmatpush.msra.mxu0 0.0
    %2191 = vmatpush.msra.mxu0 0.0
    %2192 = vmatpush.msra.mxu0 0.0
    %2193 = vmatpush.msra.mxu0 0.0
    %2194 = vmatpush.msra.mxu0 0.0
    %2195 = vmatpush.msra.mxu0 0.0
    %2196 = vmatpush.msra.mxu0 0.0
    %2197 = vmatpush.msra.mxu0 0.0
    %2198 = vmatpush.msra.mxu0 0.0
    %2199 = vmatpush.msra.mxu0 0.0
    %2200 = vmatpush.msra.mxu0 0.0
    %2201 = vmatpush.msra.mxu0 %v1982
    %2202 = vmatpush.msra.mxu0 %v1978
    %2203 = vmatpush.msra.mxu0 %v1974
    %2204 = vmatmul.f32.gmra.mxu0 %v2126
    %v2205 = vpop.f32.mrf.mxu0
    %v2206 = vadd.f32 0.0, %v2205
    %2207 = vdwg.mxu0
    %v2208 = vld [vmem:[%s14] sm:$0xff]
    %v2209 = vld [vmem:[%s14 + $0x8] sm:$0xff]
    %v2210 = vld [vmem:[%s14 + $0x10] sm:$0xff]
    %v2211 = vld [vmem:[%s14 + $0x18] sm:$0xff]
    %v2212 = vld [vmem:[%s14 + $0x20] sm:$0xff]
    %v2213 = vld [vmem:[%s14 + $0x28] sm:$0xff]
    %2214 = vmatpush.msra.mxu0 0.0
    %2215 = vmatpush.msra.mxu0 0.0
    %2216 = vmatpush.msra.mxu0 0.0
    %2217 = vmatpush.msra.mxu0 0.0
    %2218 = vmatpush.msra.mxu0 0.0
    %2219 = vmatpush.msra.mxu0 0.0
    %2220 = vmatpush.msra.mxu0 0.0
    %2221 = vmatpush.msra.mxu0 0.0
    %2222 = vmatpush.msra.mxu0 0.0
    %2223 = vmatpush.msra.mxu0 0.0
    %2224 = vmatpush.msra.mxu0 0.0
    %2225 = vmatpush.msra.mxu0 0.0
    %2226 = vmatpush.msra.mxu0 0.0
    %2227 = vmatpush.msra.mxu0 %v2212
    %2228 = vmatpush.msra.mxu0 %v2210
    %2229 = vmatpush.msra.mxu0 %v2208
    %2230 = vmatmul.f32.gmra.mxu0 %v2126
    %v2231 = vpop.f32.mrf.mxu0
    %v2232 = vadd.f32 0.0, %v2231
    %2233 = vdwg.mxu0
    %2234 = vmatpush.msra.mxu0 0.0
    %2235 = vmatpush.msra.mxu0 0.0
    %2236 = vmatpush.msra.mxu0 0.0
    %2237 = vmatpush.msra.mxu0 0.0
    %2238 = vmatpush.msra.mxu0 0.0
    %2239 = vmatpush.msra.mxu0 0.0
    %2240 = vmatpush.msra.mxu0 0.0
    %2241 = vmatpush.msra.mxu0 0.0
    %2242 = vmatpush.msra.mxu0 0.0
    %2243 = vmatpush.msra.mxu0 0.0
    %2244 = vmatpush.msra.mxu0 0.0
    %2245 = vmatpush.msra.mxu0 0.0
    %2246 = vmatpush.msra.mxu0 0.0
    %2247 = vmatpush.msra.mxu0 %v2213
    %2248 = vmatpush.msra.mxu0 %v2211
    %2249 = vmatpush.msra.mxu0 %v2209
    %2250 = vmatmul.f32.gmra.mxu0 %v2126
    %v2251 = vpop.f32.mrf.mxu0
    %v2252 = vadd.f32 0.0, %v2251
    %2253 = vdwg.mxu0
    %v2254 = vmul.f32 %v2146, %v66
    %v2255 = vmul.f32 %v2166, %v67
    %v2256 = vmul.f32 %v2186, %v68
    %v2257 = vmul.f32 %v2206, %v69
    %v2258 = vld [vmem:[%s15] sm:$0xff]
    %v2259 = vld [vmem:[%s15 + $0x8] sm:$0xff]
    %v2260 = vld [vmem:[%s15 + $0x10] sm:$0xff]
    %v2261 = vld [vmem:[%s15 + $0x18] sm:$0xff]
    %v2262 = vld [vmem:[%s15 + $0x20] sm:$0xff]
    %v2263 = vld [vmem:[%s15 + $0x28] sm:$0xff]
    %v2264 = vld [vmem:[%s15 + $0x30] sm:$0xff]
    %v2265 = vld [vmem:[%s15 + $0x38] sm:$0xff]
    %v2266 = vld [vmem:[%s15 + $0x40] sm:$0xff]
    %v2267 = vld [vmem:[%s15 + $0x48] sm:$0xff]
    %v2268 = vld [vmem:[%s15 + $0x50] sm:$0xff]
    %v2269 = vld [vmem:[%s15 + $0x58] sm:$0xff]
    %v2270 = vld [vmem:[%s15 + $0x60] sm:$0xff]
    %v2271 = vld [vmem:[%s15 + $0x68] sm:$0xff]
    %v2272 = vld [vmem:[%s15 + $0x70] sm:$0xff]
    %v2273 = vld [vmem:[%s15 + $0x78] sm:$0xff]
    %v2274 = vld [vmem:[%s15 + $0x80] sm:$0xff]
    %v2275 = vld [vmem:[%s15 + $0x88] sm:$0xff]
    %v2276 = vld [vmem:[%s15 + $0x90] sm:$0xff]
    %v2277 = vld [vmem:[%s15 + $0x98] sm:$0xff]
    %v2278 = vld [vmem:[%s15 + $0xa0] sm:$0xff]
    %v2279 = vld [vmem:[%s15 + $0xa8] sm:$0xff]
    %v2280 = vld [vmem:[%s15 + $0xb0] sm:$0xff]
    %v2281 = vld [vmem:[%s15 + $0xb8] sm:$0xff]
    %v2282 = vld [vmem:[%s15 + $0xc0] sm:$0xff]
    %v2283 = vld [vmem:[%s15 + $0xc8] sm:$0xff]
    %v2284 = vld [vmem:[%s15 + $0xd0] sm:$0xff]
    %v2285 = vld [vmem:[%s15 + $0xd8] sm:$0xff]
    %v2286 = vld [vmem:[%s15 + $0xe0] sm:$0xff]
    %v2287 = vld [vmem:[%s15 + $0xe8] sm:$0xff]
    %v2288 = vld [vmem:[%s15 + $0xf0] sm:$0xff]
    %v2289 = vld [vmem:[%s15 + $0xf8] sm:$0xff]
    %v2290 = vld [vmem:[%s15 + $0x100] sm:$0xff]
    %v2291 = vld [vmem:[%s15 + $0x108] sm:$0xff]
    %v2292 = vld [vmem:[%s15 + $0x110] sm:$0xff]
    %v2293 = vld [vmem:[%s15 + $0x118] sm:$0xff]
    %v2294 = vld [vmem:[%s15 + $0x120] sm:$0xff]
    %v2295 = vld [vmem:[%s15 + $0x128] sm:$0xff]
    %v2296 = vld [vmem:[%s15 + $0x130] sm:$0xff]
    %v2297 = vld [vmem:[%s15 + $0x138] sm:$0xff]
    %v2298 = vld [vmem:[%s15 + $0x140] sm:$0xff]
    %v2299 = vld [vmem:[%s15 + $0x148] sm:$0xff]
    %v2300 = vld [vmem:[%s15 + $0x150] sm:$0xff]
    %v2301 = vld [vmem:[%s15 + $0x158] sm:$0xff]
    %v2302 = vld [vmem:[%s15 + $0x160] sm:$0xff]
    %v2303 = vld [vmem:[%s15 + $0x168] sm:$0xff]
    %v2304 = vld [vmem:[%s15 + $0x170] sm:$0xff]
    %v2305 = vld [vmem:[%s15 + $0x178] sm:$0xff]
    %v2306 = vld [vmem:[%s15 + $0x180] sm:$0xff]
    %v2307 = vld [vmem:[%s15 + $0x188] sm:$0xff]
    %v2308 = vld [vmem:[%s15 + $0x190] sm:$0xff]
    %v2309 = vld [vmem:[%s15 + $0x198] sm:$0xff]
    %v2310 = vld [vmem:[%s15 + $0x1a0] sm:$0xff]
    %v2311 = vld [vmem:[%s15 + $0x1a8] sm:$0xff]
    %v2312 = vld [vmem:[%s15 + $0x1b0] sm:$0xff]
    %v2313 = vld [vmem:[%s15 + $0x1b8] sm:$0xff]
    %v2314 = vld [vmem:[%s15 + $0x1c0] sm:$0xff]
    %v2315 = vld [vmem:[%s15 + $0x1c8] sm:$0xff]
    %v2316 = vld [vmem:[%s15 + $0x1d0] sm:$0xff]
    %v2317 = vld [vmem:[%s15 + $0x1d8] sm:$0xff]
    %v2318 = vld [vmem:[%s15 + $0x1e0] sm:$0xff]
    %v2319 = vld [vmem:[%s15 + $0x1e8] sm:$0xff]
    %v2320 = vld [vmem:[%s15 + $0x1f0] sm:$0xff]
    %v2321 = vld [vmem:[%s15 + $0x1f8] sm:$0xff]
    %v2322 = vmul.f32 %v2232, %v74
    %v2323 = vmul.f32 %v2252, %v75
    %v2324 = vld [vmem:[%s16] sm:$0xff]
    %v2325 = vld [vmem:[%s16 + $0x8] sm:$0xff]
    %v2326 = vld [vmem:[%s16 + $0x10] sm:$0xff]
    %v2327 = vld [vmem:[%s16 + $0x18] sm:$0xff]
    %v2328 = vld [vmem:[%s16 + $0x20] sm:$0xff]
    %v2329 = vld [vmem:[%s16 + $0x28] sm:$0xff]
    %v2330 = vld [vmem:[%s16 + $0x30] sm:$0xff]
    %v2331 = vld [vmem:[%s16 + $0x38] sm:$0xff]
    %v2332 = vld [vmem:[%s16 + $0x40] sm:$0xff]
    %v2333 = vld [vmem:[%s16 + $0x48] sm:$0xff]
    %v2334 = vld [vmem:[%s16 + $0x50] sm:$0xff]
    %v2335 = vld [vmem:[%s16 + $0x58] sm:$0xff]
    %v2336 = vld [vmem:[%s16 + $0x60] sm:$0xff]
    %v2337 = vld [vmem:[%s16 + $0x68] sm:$0xff]
    %v2338 = vld [vmem:[%s16 + $0x70] sm:$0xff]
    %v2339 = vld [vmem:[%s16 + $0x78] sm:$0xff]
    %v2340 = vld [vmem:[%s16 + $0x80] sm:$0xff]
    %v2341 = vld [vmem:[%s16 + $0x88] sm:$0xff]
    %v2342 = vld [vmem:[%s16 + $0x90] sm:$0xff]
    %v2343 = vld [vmem:[%s16 + $0x98] sm:$0xff]
    %v2344 = vld [vmem:[%s16 + $0xa0] sm:$0xff]
    %v2345 = vld [vmem:[%s16 + $0xa8] sm:$0xff]
    %v2346 = vld [vmem:[%s16 + $0xb0] sm:$0xff]
    %v2347 = vld [vmem:[%s16 + $0xb8] sm:$0xff]
    %v2348 = vld [vmem:[%s16 + $0xc0] sm:$0xff]
    %v2349 = vld [vmem:[%s16 + $0xc8] sm:$0xff]
    %v2350 = vld [vmem:[%s16 + $0xd0] sm:$0xff]
    %v2351 = vld [vmem:[%s16 + $0xd8] sm:$0xff]
    %v2352 = vld [vmem:[%s16 + $0xe0] sm:$0xff]
    %v2353 = vld [vmem:[%s16 + $0xe8] sm:$0xff]
    %v2354 = vld [vmem:[%s16 + $0xf0] sm:$0xff]
    %v2355 = vld [vmem:[%s16 + $0xf8] sm:$0xff]
    %2356 = vmatpush.msra.mxu0 %v2339
    %2357 = vmatpush.msra.mxu0 %v2338
    %2358 = vmatpush.msra.mxu0 %v2337
    %2359 = vmatpush.msra.mxu0 %v2336
    %2360 = vmatpush.msra.mxu0 %v2335
    %2361 = vmatpush.msra.mxu0 %v2334
    %2362 = vmatpush.msra.mxu0 %v2333
    %2363 = vmatpush.msra.mxu0 %v2332
    %2364 = vmatpush.msra.mxu0 %v2331
    %2365 = vmatpush.msra.mxu0 %v2330
    %2366 = vmatpush.msra.mxu0 %v2329
    %2367 = vmatpush.msra.mxu0 %v2328
    %2368 = vmatpush.msra.mxu0 %v2327
    %2369 = vmatpush.msra.mxu0 %v2326
    %2370 = vmatpush.msra.mxu0 %v2325
    %2371 = vmatpush.msra.mxu0 %v2324
    %2372 = vmatmul.f32.gmra.mxu0 %v2322
    %v2373 = vpop.f32.mrf.mxu0
    %v2374 = vadd.f32 0.0, %v2373
    %2375 = vdwg.mxu0
    %2376 = vmatpush.msra.mxu0 %v2355
    %2377 = vmatpush.msra.mxu0 %v2354
    %2378 = vmatpush.msra.mxu0 %v2353
    %2379 = vmatpush.msra.mxu0 %v2352
    %2380 = vmatpush.msra.mxu0 %v2351
    %2381 = vmatpush.msra.mxu0 %v2350
    %2382 = vmatpush.msra.mxu0 %v2349
    %2383 = vmatpush.msra.mxu0 %v2348
    %2384 = vmatpush.msra.mxu0 %v2347
    %2385 = vmatpush.msra.mxu0 %v2346
    %2386 = vmatpush.msra.mxu0 %v2345
    %2387 = vmatpush.msra.mxu0 %v2344
    %2388 = vmatpush.msra.mxu0 %v2343
    %2389 = vmatpush.msra.mxu0 %v2342
    %2390 = vmatpush.msra.mxu0 %v2341
    %2391 = vmatpush.msra.mxu0 %v2340
    %2392 = vmatmul.f32.gmra.mxu0 %v2323
    %v2393 = vpop.f32.mrf.mxu0
    %v2394 = vadd.f32 %v2374, %v2393
    %2395 = vdwg.mxu0
    %2396 = vmatpush.msra.mxu0 %v2273
    %2397 = vmatpush.msra.mxu0 %v2272
    %2398 = vmatpush.msra.mxu0 %v2271
    %2399 = vmatpush.msra.mxu0 %v2270
    %2400 = vmatpush.msra.mxu0 %v2269
    %2401 = vmatpush.msra.mxu0 %v2268
    %2402 = vmatpush.msra.mxu0 %v2267
    %2403 = vmatpush.msra.mxu0 %v2266
    %2404 = vmatpush.msra.mxu0 %v2265
    %2405 = vmatpush.msra.mxu0 %v2264
    %2406 = vmatpush.msra.mxu0 %v2263
    %2407 = vmatpush.msra.mxu0 %v2262
    %2408 = vmatpush.msra.mxu0 %v2261
    %2409 = vmatpush.msra.mxu0 %v2260
    %2410 = vmatpush.msra.mxu0 %v2259
    %2411 = vmatpush.msra.mxu0 %v2258
    %2412 = vmatmul.f32.gmra.mxu0 %v2254
    %v2413 = vpop.f32.mrf.mxu0
    %v2414 = vadd.f32 %v2394, %v2413
    %2415 = vdwg.mxu0
    %2416 = vmatpush.msra.mxu0 %v2289
    %2417 = vmatpush.msra.mxu0 %v2288
    %2418 = vmatpush.msra.mxu0 %v2287
    %2419 = vmatpush.msra.mxu0 %v2286
    %2420 = vmatpush.msra.mxu0 %v2285
    %2421 = vmatpush.msra.mxu0 %v2284
    %2422 = vmatpush.msra.mxu0 %v2283
    %2423 = vmatpush.msra.mxu0 %v2282
    %2424 = vmatpush.msra.mxu0 %v2281
    %2425 = vmatpush.msra.mxu0 %v2280
    %2426 = vmatpush.msra.mxu0 %v2279
    %2427 = vmatpush.msra.mxu0 %v2278
    %2428 = vmatpush.msra.mxu0 %v2277
    %2429 = vmatpush.msra.mxu0 %v2276
    %2430 = vmatpush.msra.mxu0 %v2275
    %2431 = vmatpush.msra.mxu0 %v2274
    %2432 = vmatmul.f32.gmra.mxu0 %v2255
    %v2433 = vpop.f32.mrf.mxu0
    %v2434 = vadd.f32 %v2414, %v2433
    %2435 = vdwg.mxu0
    %2436 = vmatpush.msra.mxu0 %v2305
    %2437 = vmatpush.msra.mxu0 %v2304
    %2438 = vmatpush.msra.mxu0 %v2303
    %2439 = vmatpush.msra.mxu0 %v2302
    %2440 = vmatpush.msra.mxu0 %v2301
    %2441 = vmatpush.msra.mxu0 %v2300
    %2442 = vmatpush.msra.mxu0 %v2299
    %2443 = vmatpush.msra.mxu0 %v2298
    %2444 = vmatpush.msra.mxu0 %v2297
    %2445 = vmatpush.msra.mxu0 %v2296
    %2446 = vmatpush.msra.mxu0 %v2295
    %2447 = vmatpush.msra.mxu0 %v2294
    %2448 = vmatpush.msra.mxu0 %v2293
    %2449 = vmatpush.msra.mxu0 %v2292
    %2450 = vmatpush.msra.mxu0 %v2291
    %2451 = vmatpush.msra.mxu0 %v2290
    %2452 = vmatmul.f32.gmra.mxu0 %v2256
    %v2453 = vpop.f32.mrf.mxu0
    %v2454 = vadd.f32 %v2434, %v2453
    %2455 = vdwg.mxu0
    %2456 = vmatpush.msra.mxu0 %v2321
    %2457 = vmatpush.msra.mxu0 %v2320
    %2458 = vmatpush.msra.mxu0 %v2319
    %2459 = vmatpush.msra.mxu0 %v2318
    %2460 = vmatpush.msra.mxu0 %v2317
    %2461 = vmatpush.msra.mxu0 %v2316
    %2462 = vmatpush.msra.mxu0 %v2315
    %2463 = vmatpush.msra.mxu0 %v2314
    %2464 = vmatpush.msra.mxu0 %v2313
    %2465 = vmatpush.msra.mxu0 %v2312
    %2466 = vmatpush.msra.mxu0 %v2311
    %2467 = vmatpush.msra.mxu0 %v2310
    %2468 = vmatpush.msra.mxu0 %v2309
    %2469 = vmatpush.msra.mxu0 %v2308
    %2470 = vmatpush.msra.mxu0 %v2307
    %2471 = vmatpush.msra.mxu0 %v2306
    %2472 = vmatmul.f32.gmra.mxu0 %v2257
    %v2473 = vpop.f32.mrf.mxu0
    %v2474 = vadd.f32 %v2454, %v2473
    %2475 = vdwg.mxu0
    %2476 = vst.msk [vmem:[#allocation2] sm:$0xff] %vm86, %v2474
    // Predicated region
    $region82: #{tpu_custom_call.1} parent=1 // pred_check
      _
    $region83: #{tpu_custom_call.1} parent=1 // pred_check_branch
      %2478 = sbr.rel (0) target = $region85
    $region84: #{tpu_custom_call.1} parent=1 // pred_region
      %2480 = vsyncadd [#allocation3], 0
      %s2482 = sshll.u32 [#allocation2], 4
      %s2483 = int_to_ptr.vmem [resolvable:$true] %s2482
      %s2484 = sshll.u32 %s20, 4
      %s2485 = int_to_ptr.hbm [resolvable:$true] %s2484
      %2487 = dma.vmem_to_hbm [thread:$0]  %s2483, 128, %s2485, [#allocation3]
    $region85: #{tpu_custom_call.1} parent=1 // pred_fallthru
      _
    // Predicated region
    $region86: #{tpu_custom_call.1} parent=1 // pred_check
      _
    $region87: #{tpu_custom_call.1} parent=1 // pred_check_branch
      %2489 = sbr.rel (0) target = $region89
    $region88: #{tpu_custom_call.1} parent=1 // pred_region
      %2491 = dma.done [#allocation3], 128
    $region89: #{tpu_custom_call.1} parent=1 // pred_fallthru
      _
    %2492 = vsyncpa [#allocation3], 1

</llo_original>
